<compile_context>
chip_gen: v6e
topology: v6e:2x2x1
jax: 0.10.0
libtpu: 0.0.40
codegen_flags: <defaults>
</compile_context>

<pallas_src>
import numpy as np
import jax
import jax.numpy as jnp
from jax import lax
from jax.experimental import pallas as pl
from jax.experimental.pallas import tpu as pltpu


def _make_residual_block_kernel(C, H, W):
    HW = H * W

    def kernel(x_ref, w0_ref, b0_ref, w1_ref, b1_ref, mask_ref, o_ref):
        x = x_ref[0]                                        # (C, HW) f32

        def conv3x3(inp, w_ref, b_ref):
            """3x3 'SAME' conv of inp (C, HW), already ReLU'd, on the VPU.

            w_ref : VMEM (9*C, C, 1) weight table, row tap*C+ci = output-channel
                    column w[kh, kw, ci, :].
            b_ref : VMEM (C, 1) bias column.
            """
            # Accumulator initialised with the bias column broadcast over lanes.
            acc = jnp.broadcast_to(b_ref[...], (C, HW))
            tap = 0
            for dh in (-1, 0, 1):
                for dw in (-1, 0, 1):
                    if dh == 0 and dw == 0:
                        shifted = inp
                    else:
                        s = dh * W + dw
                        # shifted[c, p] == inp[c, p + s]; wrap-around junk is
                        # zeroed by the precomputed boundary mask below.
                        shifted = pltpu.roll(inp, shift=(-s) % HW, axis=1)
                        m = mask_ref[pl.ds(tap, 1), :]       # (1, HW) 0/1 f32
                        shifted = shifted * m
                    # 9*C vectorized (C, HW) FMAs, each fed by one (C, 1)
                    # weight-column vector load.
                    for ci in range(C):
                        xi = shifted[ci:ci + 1, :]           # (1, HW)
                        wcol = w_ref[tap * C + ci]           # (C, 1) vld
                        acc = acc + wcol * xi                # (C, HW)
                    tap += 1
            return acc

        h = conv3x3(jnp.maximum(x, 0.0), w0_ref, b0_ref)     # conv0(relu(x)) + b0
        y = conv3x3(jnp.maximum(h, 0.0), w1_ref, b1_ref)     # conv1(relu(h)) + b1
        o_ref[0] = y + x                                     # residual uses pre-ReLU x

    return kernel


def _boundary_masks(H, W):
    """Host-side per-tap zero-padding masks, shape (9, H*W) f32 in {0, 1}."""
    HW = H * W
    rows = np.arange(HW) // W
    cols = np.arange(HW) % W
    masks = np.ones((9, HW), np.float32)
    tap = 0
    for dh in (-1, 0, 1):
        for dw in (-1, 0, 1):
            m = np.ones((HW,), np.float32)
            if dh == -1:
                m *= (rows >= 1)
            elif dh == 1:
                m *= (rows <= H - 2)
            if dw == -1:
                m *= (cols >= 1)
            elif dw == 1:
                m *= (cols <= W - 2)
            masks[tap] = m
            tap += 1
    return jnp.asarray(masks)


def residual_block_forward(x_nchw, w0, b0, w1, b1):
    """Fused Pallas forward.  x: (N,C,H,W); w0/w1: (3,3,C,C) HWIO; b0/b1: (C,)."""
    N, C, H, W = x_nchw.shape
    HW = H * W
    # Lane-dense output guard: if HW were not a multiple of 128 we would pad the
    # flattened spatial axis (and fold the pad into the boundary masks).
    assert HW % 128 == 0, "flattened spatial axis must be a multiple of 128"

    x2 = x_nchw.astype(jnp.float32).reshape(N, C, HW)        # free, lane-dense view

    # Weight tables: row (tap*C + ci) holds the (C_out, 1) column for that
    # (tap, input-channel) pair -> one aligned vector load per in-kernel FMA.
    def to_table(w):
        return jnp.asarray(w, jnp.float32).reshape(9 * C, C)[:, :, None]   # (9C, C, 1)

    w0t, w1t = to_table(w0), to_table(w1)
    b0c = jnp.asarray(b0, jnp.float32).reshape(C, 1)
    b1c = jnp.asarray(b1, jnp.float32).reshape(C, 1)
    masks = _boundary_masks(H, W)

    out = pl.pallas_call(
        _make_residual_block_kernel(C, H, W),
        out_shape=jax.ShapeDtypeStruct((N, C, HW), jnp.float32),
        grid=(N,),
        in_specs=[
            pl.BlockSpec((1, C, HW), lambda n: (n, 0, 0)),      # x block (VMEM)
            pl.BlockSpec((9 * C, C, 1), lambda n: (0, 0, 0)),   # w0 column table
            pl.BlockSpec((C, 1), lambda n: (0, 0)),             # b0 column
            pl.BlockSpec((9 * C, C, 1), lambda n: (0, 0, 0)),   # w1 column table
            pl.BlockSpec((C, 1), lambda n: (0, 0)),             # b1 column
            pl.BlockSpec((9, HW), lambda n: (0, 0)),            # boundary masks
        ],
        out_specs=pl.BlockSpec((1, C, HW), lambda n: (n, 0, 0)),
        compiler_params=pltpu.CompilerParams(dimension_semantics=("parallel",)),
    )(x2, w0t, b0c, w1t, b1c, masks)
    return out.reshape(N, C, H, W)


class ResidualBlockPallas:
    """Pallas port of the PyTorch ResidualBlock (deterministic synthetic weights)."""

    def __init__(self, channels, key):
        k0, k1, k2, k3 = jax.random.split(key, 4)
        fan_in = channels * 3 * 3
        scale = 1.0 / jnp.sqrt(jnp.float32(fan_in))
        # HWIO weight layout (equivalent to transposing PyTorch's OIHW).
        self.w0 = jax.random.normal(k0, (3, 3, channels, channels), jnp.float32) * scale
        self.b0 = jax.random.normal(k1, (channels,), jnp.float32) * scale
        self.w1 = jax.random.normal(k2, (3, 3, channels, channels), jnp.float32) * scale
        self.b1 = jax.random.normal(k3, (channels,), jnp.float32) * scale

    def __call__(self, x_nchw):
        return residual_block_forward(x_nchw, self.w0, self.b0, self.w1, self.b1)


def _reference_block(x_nchw, w0, b0, w1, b1):
    x = jnp.transpose(x_nchw, (0, 2, 3, 1)).astype(jnp.float32)
    dn = ("NHWC", "HWIO", "NHWC")
    h = lax.conv_general_dilated(
        jnp.maximum(x, 0.0), w0, (1, 1), "SAME", dimension_numbers=dn,
        precision=lax.Precision.HIGHEST) + b0
    h = lax.conv_general_dilated(
        jnp.maximum(h, 0.0), w1, (1, 1), "SAME", dimension_numbers=dn,
        precision=lax.Precision.HIGHEST) + b1
    y = h + x
    return jnp.transpose(y, (0, 3, 1, 2))


if __name__ == "__main__":
    key = jax.random.PRNGKey(0)
    k_x, k_w = jax.random.split(key)

    N, C, H, W = 2, 4, 16, 16
    x = jax.random.normal(k_x, (N, C, H, W), jnp.float32)   # NCHW like the PyTorch module

    block = ResidualBlockPallas(C, k_w)
    out = jax.block_until_ready(block(x))

    ref = _reference_block(x, block.w0, block.b0, block.w1, block.b1)
    assert out.shape == x.shape and out.dtype == jnp.float32
    assert jnp.allclose(out, ref, rtol=1e-4, atol=1e-4), "mismatch vs lax.conv reference"

    print("KERNEL_OK")
</pallas_src>

<mosaic_0001>
module attributes {stable_mosaic.version = 11 : i64} {
  func.func @kernel(%arg0: i32, %arg1: memref<1x4x256xf32, #tpu.memory_space<vmem>>, %arg2: memref<36x4x1xf32, #tpu.memory_space<vmem>>, %arg3: memref<4x1xf32, #tpu.memory_space<vmem>>, %arg4: memref<36x4x1xf32, #tpu.memory_space<vmem>>, %arg5: memref<4x1xf32, #tpu.memory_space<vmem>>, %arg6: memref<9x256xf32, #tpu.memory_space<vmem>>, %arg7: memref<1x4x256xf32, #tpu.memory_space<vmem>>) attributes {dimension_semantics = [#tpu.dimension_semantics<parallel>], iteration_bounds = array<i64: 2>, scalar_prefetch = 0 : i64, scratch_operands = 0 : i64, tpu.core_type = #tpu.core_type<tc>, window_params = [{transform_indices = @transform_0, window_bounds = array<i64: 1, 4, 256>}, {pipeline_mode = #tpu.pipeline_mode<synchronous>, transform_indices = @transform_1, window_bounds = array<i64: 36, 4, 1>}, {pipeline_mode = #tpu.pipeline_mode<synchronous>, transform_indices = @transform_2, window_bounds = array<i64: 4, 1>}, {pipeline_mode = #tpu.pipeline_mode<synchronous>, transform_indices = @transform_3, window_bounds = array<i64: 36, 4, 1>}, {pipeline_mode = #tpu.pipeline_mode<synchronous>, transform_indices = @transform_4, window_bounds = array<i64: 4, 1>}, {pipeline_mode = #tpu.pipeline_mode<synchronous>, transform_indices = @transform_5, window_bounds = array<i64: 9, 256>}, {transform_indices = @transform_6, window_bounds = array<i64: 1, 4, 256>}]} {
    %c0 = arith.constant 0 : index
    %c0_0 = arith.constant 0 : index
    %c0_1 = arith.constant 0 : index
    %0 = vector.load %arg1[%c0, %c0_0, %c0_1] : memref<1x4x256xf32, #tpu.memory_space<vmem>>, vector<1x4x256xf32>
    %1 = vector.shape_cast %0 : vector<1x4x256xf32> to vector<4x256xf32>
    %cst = arith.constant 0.000000e+00 : f32
    %2 = vector.broadcast %cst : f32 to vector<4x256xf32>
    %3 = arith.maximumf %1, %2 : vector<4x256xf32>
    %c0_2 = arith.constant 0 : index
    %c0_3 = arith.constant 0 : index
    %4 = vector.load %arg3[%c0_2, %c0_3] : memref<4x1xf32, #tpu.memory_space<vmem>>, vector<4x1xf32>
    %5 = vector.shape_cast %4 : vector<4x1xf32> to vector<4x1xf32>
    %6 = vector.broadcast %5 : vector<4x1xf32> to vector<4x256xf32>
    %c17_i32 = arith.constant 17 : i32
    %7 = tpu.dynamic_rotate %3 by %c17_i32 dim 1 : vector<4x256xf32>, i32 -> vector<4x256xf32>
    %c0_4 = arith.constant 0 : index
    %c0_5 = arith.constant 0 : index
    %8 = vector.load %arg6[%c0_4, %c0_5] : memref<9x256xf32, #tpu.memory_space<vmem>>, vector<1x256xf32>
    %9 = vector.broadcast %8 : vector<1x256xf32> to vector<4x256xf32>
    %10 = arith.mulf %7, %9 : vector<4x256xf32>
    %11 = vector.extract_strided_slice %10 {offsets = [0, 0], sizes = [1, 256], strides = [1, 1]} : vector<4x256xf32> to vector<1x256xf32>
    %c0_6 = arith.constant 0 : index
    %c0_7 = arith.constant 0 : index
    %c0_8 = arith.constant 0 : index
    %12 = vector.load %arg2[%c0_6, %c0_7, %c0_8] : memref<36x4x1xf32, #tpu.memory_space<vmem>>, vector<1x4x1xf32>
    %13 = vector.shape_cast %12 : vector<1x4x1xf32> to vector<4x1xf32>
    %14 = vector.broadcast %13 : vector<4x1xf32> to vector<4x256xf32>
    %15 = vector.broadcast %11 : vector<1x256xf32> to vector<4x256xf32>
    %16 = arith.mulf %14, %15 : vector<4x256xf32>
    %17 = arith.addf %6, %16 : vector<4x256xf32>
    %18 = vector.extract_strided_slice %10 {offsets = [1, 0], sizes = [1, 256], strides = [1, 1]} : vector<4x256xf32> to vector<1x256xf32>
    %c1 = arith.constant 1 : index
    %c0_9 = arith.constant 0 : index
    %c0_10 = arith.constant 0 : index
    %19 = vector.load %arg2[%c1, %c0_9, %c0_10] : memref<36x4x1xf32, #tpu.memory_space<vmem>>, vector<1x4x1xf32>
    %20 = vector.shape_cast %19 : vector<1x4x1xf32> to vector<4x1xf32>
    %21 = vector.broadcast %20 : vector<4x1xf32> to vector<4x256xf32>
    %22 = vector.broadcast %18 : vector<1x256xf32> to vector<4x256xf32>
    %23 = arith.mulf %21, %22 : vector<4x256xf32>
    %24 = arith.addf %17, %23 : vector<4x256xf32>
    %25 = vector.extract_strided_slice %10 {offsets = [2, 0], sizes = [1, 256], strides = [1, 1]} : vector<4x256xf32> to vector<1x256xf32>
    %c2 = arith.constant 2 : index
    %c0_11 = arith.constant 0 : index
    %c0_12 = arith.constant 0 : index
    %26 = vector.load %arg2[%c2, %c0_11, %c0_12] : memref<36x4x1xf32, #tpu.memory_space<vmem>>, vector<1x4x1xf32>
    %27 = vector.shape_cast %26 : vector<1x4x1xf32> to vector<4x1xf32>
    %28 = vector.broadcast %27 : vector<4x1xf32> to vector<4x256xf32>
    %29 = vector.broadcast %25 : vector<1x256xf32> to vector<4x256xf32>
    %30 = arith.mulf %28, %29 : vector<4x256xf32>
    %31 = arith.addf %24, %30 : vector<4x256xf32>
    %32 = vector.extract_strided_slice %10 {offsets = [3, 0], sizes = [1, 256], strides = [1, 1]} : vector<4x256xf32> to vector<1x256xf32>
    %c3 = arith.constant 3 : index
    %c0_13 = arith.constant 0 : index
    %c0_14 = arith.constant 0 : index
    %33 = vector.load %arg2[%c3, %c0_13, %c0_14] : memref<36x4x1xf32, #tpu.memory_space<vmem>>, vector<1x4x1xf32>
    %34 = vector.shape_cast %33 : vector<1x4x1xf32> to vector<4x1xf32>
    %35 = vector.broadcast %34 : vector<4x1xf32> to vector<4x256xf32>
    %36 = vector.broadcast %32 : vector<1x256xf32> to vector<4x256xf32>
    %37 = arith.mulf %35, %36 : vector<4x256xf32>
    %38 = arith.addf %31, %37 : vector<4x256xf32>
    %c16_i32 = arith.constant 16 : i32
    %39 = tpu.dynamic_rotate %3 by %c16_i32 dim 1 : vector<4x256xf32>, i32 -> vector<4x256xf32>
    %c1_15 = arith.constant 1 : index
    %c0_16 = arith.constant 0 : index
    %40 = vector.load %arg6[%c1_15, %c0_16] : memref<9x256xf32, #tpu.memory_space<vmem>>, vector<1x256xf32>
    %41 = vector.broadcast %40 : vector<1x256xf32> to vector<4x256xf32>
    %42 = arith.mulf %39, %41 : vector<4x256xf32>
    %43 = vector.extract_strided_slice %42 {offsets = [0, 0], sizes = [1, 256], strides = [1, 1]} : vector<4x256xf32> to vector<1x256xf32>
    %c4 = arith.constant 4 : index
    %c0_17 = arith.constant 0 : index
    %c0_18 = arith.constant 0 : index
    %44 = vector.load %arg2[%c4, %c0_17, %c0_18] : memref<36x4x1xf32, #tpu.memory_space<vmem>>, vector<1x4x1xf32>
    %45 = vector.shape_cast %44 : vector<1x4x1xf32> to vector<4x1xf32>
    %46 = vector.broadcast %45 : vector<4x1xf32> to vector<4x256xf32>
    %47 = vector.broadcast %43 : vector<1x256xf32> to vector<4x256xf32>
    %48 = arith.mulf %46, %47 : vector<4x256xf32>
    %49 = arith.addf %38, %48 : vector<4x256xf32>
    %50 = vector.extract_strided_slice %42 {offsets = [1, 0], sizes = [1, 256], strides = [1, 1]} : vector<4x256xf32> to vector<1x256xf32>
    %c5 = arith.constant 5 : index
    %c0_19 = arith.constant 0 : index
    %c0_20 = arith.constant 0 : index
    %51 = vector.load %arg2[%c5, %c0_19, %c0_20] : memref<36x4x1xf32, #tpu.memory_space<vmem>>, vector<1x4x1xf32>
    %52 = vector.shape_cast %51 : vector<1x4x1xf32> to vector<4x1xf32>
    %53 = vector.broadcast %52 : vector<4x1xf32> to vector<4x256xf32>
    %54 = vector.broadcast %50 : vector<1x256xf32> to vector<4x256xf32>
    %55 = arith.mulf %53, %54 : vector<4x256xf32>
    %56 = arith.addf %49, %55 : vector<4x256xf32>
    %57 = vector.extract_strided_slice %42 {offsets = [2, 0], sizes = [1, 256], strides = [1, 1]} : vector<4x256xf32> to vector<1x256xf32>
    %c6 = arith.constant 6 : index
    %c0_21 = arith.constant 0 : index
    %c0_22 = arith.constant 0 : index
    %58 = vector.load %arg2[%c6, %c0_21, %c0_22] : memref<36x4x1xf32, #tpu.memory_space<vmem>>, vector<1x4x1xf32>
    %59 = vector.shape_cast %58 : vector<1x4x1xf32> to vector<4x1xf32>
    %60 = vector.broadcast %59 : vector<4x1xf32> to vector<4x256xf32>
    %61 = vector.broadcast %57 : vector<1x256xf32> to vector<4x256xf32>
    %62 = arith.mulf %60, %61 : vector<4x256xf32>
    %63 = arith.addf %56, %62 : vector<4x256xf32>
    %64 = vector.extract_strided_slice %42 {offsets = [3, 0], sizes = [1, 256], strides = [1, 1]} : vector<4x256xf32> to vector<1x256xf32>
    %c7 = arith.constant 7 : index
    %c0_23 = arith.constant 0 : index
    %c0_24 = arith.constant 0 : index
    %65 = vector.load %arg2[%c7, %c0_23, %c0_24] : memref<36x4x1xf32, #tpu.memory_space<vmem>>, vector<1x4x1xf32>
    %66 = vector.shape_cast %65 : vector<1x4x1xf32> to vector<4x1xf32>
    %67 = vector.broadcast %66 : vector<4x1xf32> to vector<4x256xf32>
    %68 = vector.broadcast %64 : vector<1x256xf32> to vector<4x256xf32>
    %69 = arith.mulf %67, %68 : vector<4x256xf32>
    %70 = arith.addf %63, %69 : vector<4x256xf32>
    %c15_i32 = arith.constant 15 : i32
    %71 = tpu.dynamic_rotate %3 by %c15_i32 dim 1 : vector<4x256xf32>, i32 -> vector<4x256xf32>
    %c2_25 = arith.constant 2 : index
    %c0_26 = arith.constant 0 : index
    %72 = vector.load %arg6[%c2_25, %c0_26] : memref<9x256xf32, #tpu.memory_space<vmem>>, vector<1x256xf32>
    %73 = vector.broadcast %72 : vector<1x256xf32> to vector<4x256xf32>
    %74 = arith.mulf %71, %73 : vector<4x256xf32>
    %75 = vector.extract_strided_slice %74 {offsets = [0, 0], sizes = [1, 256], strides = [1, 1]} : vector<4x256xf32> to vector<1x256xf32>
    %c8 = arith.constant 8 : index
    %c0_27 = arith.constant 0 : index
    %c0_28 = arith.constant 0 : index
    %76 = vector.load %arg2[%c8, %c0_27, %c0_28] : memref<36x4x1xf32, #tpu.memory_space<vmem>>, vector<1x4x1xf32>
    %77 = vector.shape_cast %76 : vector<1x4x1xf32> to vector<4x1xf32>
    %78 = vector.broadcast %77 : vector<4x1xf32> to vector<4x256xf32>
    %79 = vector.broadcast %75 : vector<1x256xf32> to vector<4x256xf32>
    %80 = arith.mulf %78, %79 : vector<4x256xf32>
    %81 = arith.addf %70, %80 : vector<4x256xf32>
    %82 = vector.extract_strided_slice %74 {offsets = [1, 0], sizes = [1, 256], strides = [1, 1]} : vector<4x256xf32> to vector<1x256xf32>
    %c9 = arith.constant 9 : index
    %c0_29 = arith.constant 0 : index
    %c0_30 = arith.constant 0 : index
    %83 = vector.load %arg2[%c9, %c0_29, %c0_30] : memref<36x4x1xf32, #tpu.memory_space<vmem>>, vector<1x4x1xf32>
    %84 = vector.shape_cast %83 : vector<1x4x1xf32> to vector<4x1xf32>
    %85 = vector.broadcast %84 : vector<4x1xf32> to vector<4x256xf32>
    %86 = vector.broadcast %82 : vector<1x256xf32> to vector<4x256xf32>
    %87 = arith.mulf %85, %86 : vector<4x256xf32>
    %88 = arith.addf %81, %87 : vector<4x256xf32>
    %89 = vector.extract_strided_slice %74 {offsets = [2, 0], sizes = [1, 256], strides = [1, 1]} : vector<4x256xf32> to vector<1x256xf32>
    %c10 = arith.constant 10 : index
    %c0_31 = arith.constant 0 : index
    %c0_32 = arith.constant 0 : index
    %90 = vector.load %arg2[%c10, %c0_31, %c0_32] : memref<36x4x1xf32, #tpu.memory_space<vmem>>, vector<1x4x1xf32>
    %91 = vector.shape_cast %90 : vector<1x4x1xf32> to vector<4x1xf32>
    %92 = vector.broadcast %91 : vector<4x1xf32> to vector<4x256xf32>
    %93 = vector.broadcast %89 : vector<1x256xf32> to vector<4x256xf32>
    %94 = arith.mulf %92, %93 : vector<4x256xf32>
    %95 = arith.addf %88, %94 : vector<4x256xf32>
    %96 = vector.extract_strided_slice %74 {offsets = [3, 0], sizes = [1, 256], strides = [1, 1]} : vector<4x256xf32> to vector<1x256xf32>
    %c11 = arith.constant 11 : index
    %c0_33 = arith.constant 0 : index
    %c0_34 = arith.constant 0 : index
    %97 = vector.load %arg2[%c11, %c0_33, %c0_34] : memref<36x4x1xf32, #tpu.memory_space<vmem>>, vector<1x4x1xf32>
    %98 = vector.shape_cast %97 : vector<1x4x1xf32> to vector<4x1xf32>
    %99 = vector.broadcast %98 : vector<4x1xf32> to vector<4x256xf32>
    %100 = vector.broadcast %96 : vector<1x256xf32> to vector<4x256xf32>
    %101 = arith.mulf %99, %100 : vector<4x256xf32>
    %102 = arith.addf %95, %101 : vector<4x256xf32>
    %c1_i32 = arith.constant 1 : i32
    %103 = tpu.dynamic_rotate %3 by %c1_i32 dim 1 : vector<4x256xf32>, i32 -> vector<4x256xf32>
    %c3_35 = arith.constant 3 : index
    %c0_36 = arith.constant 0 : index
    %104 = vector.load %arg6[%c3_35, %c0_36] : memref<9x256xf32, #tpu.memory_space<vmem>>, vector<1x256xf32>
    %105 = vector.broadcast %104 : vector<1x256xf32> to vector<4x256xf32>
    %106 = arith.mulf %103, %105 : vector<4x256xf32>
    %107 = vector.extract_strided_slice %106 {offsets = [0, 0], sizes = [1, 256], strides = [1, 1]} : vector<4x256xf32> to vector<1x256xf32>
    %c12 = arith.constant 12 : index
    %c0_37 = arith.constant 0 : index
    %c0_38 = arith.constant 0 : index
    %108 = vector.load %arg2[%c12, %c0_37, %c0_38] : memref<36x4x1xf32, #tpu.memory_space<vmem>>, vector<1x4x1xf32>
    %109 = vector.shape_cast %108 : vector<1x4x1xf32> to vector<4x1xf32>
    %110 = vector.broadcast %109 : vector<4x1xf32> to vector<4x256xf32>
    %111 = vector.broadcast %107 : vector<1x256xf32> to vector<4x256xf32>
    %112 = arith.mulf %110, %111 : vector<4x256xf32>
    %113 = arith.addf %102, %112 : vector<4x256xf32>
    %114 = vector.extract_strided_slice %106 {offsets = [1, 0], sizes = [1, 256], strides = [1, 1]} : vector<4x256xf32> to vector<1x256xf32>
    %c13 = arith.constant 13 : index
    %c0_39 = arith.constant 0 : index
    %c0_40 = arith.constant 0 : index
    %115 = vector.load %arg2[%c13, %c0_39, %c0_40] : memref<36x4x1xf32, #tpu.memory_space<vmem>>, vector<1x4x1xf32>
    %116 = vector.shape_cast %115 : vector<1x4x1xf32> to vector<4x1xf32>
    %117 = vector.broadcast %116 : vector<4x1xf32> to vector<4x256xf32>
    %118 = vector.broadcast %114 : vector<1x256xf32> to vector<4x256xf32>
    %119 = arith.mulf %117, %118 : vector<4x256xf32>
    %120 = arith.addf %113, %119 : vector<4x256xf32>
    %121 = vector.extract_strided_slice %106 {offsets = [2, 0], sizes = [1, 256], strides = [1, 1]} : vector<4x256xf32> to vector<1x256xf32>
    %c14 = arith.constant 14 : index
    %c0_41 = arith.constant 0 : index
    %c0_42 = arith.constant 0 : index
    %122 = vector.load %arg2[%c14, %c0_41, %c0_42] : memref<36x4x1xf32, #tpu.memory_space<vmem>>, vector<1x4x1xf32>
    %123 = vector.shape_cast %122 : vector<1x4x1xf32> to vector<4x1xf32>
    %124 = vector.broadcast %123 : vector<4x1xf32> to vector<4x256xf32>
    %125 = vector.broadcast %121 : vector<1x256xf32> to vector<4x256xf32>
    %126 = arith.mulf %124, %125 : vector<4x256xf32>
    %127 = arith.addf %120, %126 : vector<4x256xf32>
    %128 = vector.extract_strided_slice %106 {offsets = [3, 0], sizes = [1, 256], strides = [1, 1]} : vector<4x256xf32> to vector<1x256xf32>
    %c15 = arith.constant 15 : index
    %c0_43 = arith.constant 0 : index
    %c0_44 = arith.constant 0 : index
    %129 = vector.load %arg2[%c15, %c0_43, %c0_44] : memref<36x4x1xf32, #tpu.memory_space<vmem>>, vector<1x4x1xf32>
    %130 = vector.shape_cast %129 : vector<1x4x1xf32> to vector<4x1xf32>
    %131 = vector.broadcast %130 : vector<4x1xf32> to vector<4x256xf32>
    %132 = vector.broadcast %128 : vector<1x256xf32> to vector<4x256xf32>
    %133 = arith.mulf %131, %132 : vector<4x256xf32>
    %134 = arith.addf %127, %133 : vector<4x256xf32>
    %135 = vector.extract_strided_slice %3 {offsets = [0, 0], sizes = [1, 256], strides = [1, 1]} : vector<4x256xf32> to vector<1x256xf32>
    %c16 = arith.constant 16 : index
    %c0_45 = arith.constant 0 : index
    %c0_46 = arith.constant 0 : index
    %136 = vector.load %arg2[%c16, %c0_45, %c0_46] : memref<36x4x1xf32, #tpu.memory_space<vmem>>, vector<1x4x1xf32>
    %137 = vector.shape_cast %136 : vector<1x4x1xf32> to vector<4x1xf32>
    %138 = vector.broadcast %137 : vector<4x1xf32> to vector<4x256xf32>
    %139 = vector.broadcast %135 : vector<1x256xf32> to vector<4x256xf32>
    %140 = arith.mulf %138, %139 : vector<4x256xf32>
    %141 = arith.addf %134, %140 : vector<4x256xf32>
    %142 = vector.extract_strided_slice %3 {offsets = [1, 0], sizes = [1, 256], strides = [1, 1]} : vector<4x256xf32> to vector<1x256xf32>
    %c17 = arith.constant 17 : index
    %c0_47 = arith.constant 0 : index
    %c0_48 = arith.constant 0 : index
    %143 = vector.load %arg2[%c17, %c0_47, %c0_48] : memref<36x4x1xf32, #tpu.memory_space<vmem>>, vector<1x4x1xf32>
    %144 = vector.shape_cast %143 : vector<1x4x1xf32> to vector<4x1xf32>
    %145 = vector.broadcast %144 : vector<4x1xf32> to vector<4x256xf32>
    %146 = vector.broadcast %142 : vector<1x256xf32> to vector<4x256xf32>
    %147 = arith.mulf %145, %146 : vector<4x256xf32>
    %148 = arith.addf %141, %147 : vector<4x256xf32>
    %149 = vector.extract_strided_slice %3 {offsets = [2, 0], sizes = [1, 256], strides = [1, 1]} : vector<4x256xf32> to vector<1x256xf32>
    %c18 = arith.constant 18 : index
    %c0_49 = arith.constant 0 : index
    %c0_50 = arith.constant 0 : index
    %150 = vector.load %arg2[%c18, %c0_49, %c0_50] : memref<36x4x1xf32, #tpu.memory_space<vmem>>, vector<1x4x1xf32>
    %151 = vector.shape_cast %150 : vector<1x4x1xf32> to vector<4x1xf32>
    %152 = vector.broadcast %151 : vector<4x1xf32> to vector<4x256xf32>
    %153 = vector.broadcast %149 : vector<1x256xf32> to vector<4x256xf32>
    %154 = arith.mulf %152, %153 : vector<4x256xf32>
    %155 = arith.addf %148, %154 : vector<4x256xf32>
    %156 = vector.extract_strided_slice %3 {offsets = [3, 0], sizes = [1, 256], strides = [1, 1]} : vector<4x256xf32> to vector<1x256xf32>
    %c19 = arith.constant 19 : index
    %c0_51 = arith.constant 0 : index
    %c0_52 = arith.constant 0 : index
    %157 = vector.load %arg2[%c19, %c0_51, %c0_52] : memref<36x4x1xf32, #tpu.memory_space<vmem>>, vector<1x4x1xf32>
    %158 = vector.shape_cast %157 : vector<1x4x1xf32> to vector<4x1xf32>
    %159 = vector.broadcast %158 : vector<4x1xf32> to vector<4x256xf32>
    %160 = vector.broadcast %156 : vector<1x256xf32> to vector<4x256xf32>
    %161 = arith.mulf %159, %160 : vector<4x256xf32>
    %162 = arith.addf %155, %161 : vector<4x256xf32>
    %c255_i32 = arith.constant 255 : i32
    %163 = tpu.dynamic_rotate %3 by %c255_i32 dim 1 : vector<4x256xf32>, i32 -> vector<4x256xf32>
    %c5_53 = arith.constant 5 : index
    %c0_54 = arith.constant 0 : index
    %164 = vector.load %arg6[%c5_53, %c0_54] : memref<9x256xf32, #tpu.memory_space<vmem>>, vector<1x256xf32>
    %165 = vector.broadcast %164 : vector<1x256xf32> to vector<4x256xf32>
    %166 = arith.mulf %163, %165 : vector<4x256xf32>
    %167 = vector.extract_strided_slice %166 {offsets = [0, 0], sizes = [1, 256], strides = [1, 1]} : vector<4x256xf32> to vector<1x256xf32>
    %c20 = arith.constant 20 : index
    %c0_55 = arith.constant 0 : index
    %c0_56 = arith.constant 0 : index
    %168 = vector.load %arg2[%c20, %c0_55, %c0_56] : memref<36x4x1xf32, #tpu.memory_space<vmem>>, vector<1x4x1xf32>
    %169 = vector.shape_cast %168 : vector<1x4x1xf32> to vector<4x1xf32>
    %170 = vector.broadcast %169 : vector<4x1xf32> to vector<4x256xf32>
    %171 = vector.broadcast %167 : vector<1x256xf32> to vector<4x256xf32>
    %172 = arith.mulf %170, %171 : vector<4x256xf32>
    %173 = arith.addf %162, %172 : vector<4x256xf32>
    %174 = vector.extract_strided_slice %166 {offsets = [1, 0], sizes = [1, 256], strides = [1, 1]} : vector<4x256xf32> to vector<1x256xf32>
    %c21 = arith.constant 21 : index
    %c0_57 = arith.constant 0 : index
    %c0_58 = arith.constant 0 : index
    %175 = vector.load %arg2[%c21, %c0_57, %c0_58] : memref<36x4x1xf32, #tpu.memory_space<vmem>>, vector<1x4x1xf32>
    %176 = vector.shape_cast %175 : vector<1x4x1xf32> to vector<4x1xf32>
    %177 = vector.broadcast %176 : vector<4x1xf32> to vector<4x256xf32>
    %178 = vector.broadcast %174 : vector<1x256xf32> to vector<4x256xf32>
    %179 = arith.mulf %177, %178 : vector<4x256xf32>
    %180 = arith.addf %173, %179 : vector<4x256xf32>
    %181 = vector.extract_strided_slice %166 {offsets = [2, 0], sizes = [1, 256], strides = [1, 1]} : vector<4x256xf32> to vector<1x256xf32>
    %c22 = arith.constant 22 : index
    %c0_59 = arith.constant 0 : index
    %c0_60 = arith.constant 0 : index
    %182 = vector.load %arg2[%c22, %c0_59, %c0_60] : memref<36x4x1xf32, #tpu.memory_space<vmem>>, vector<1x4x1xf32>
    %183 = vector.shape_cast %182 : vector<1x4x1xf32> to vector<4x1xf32>
    %184 = vector.broadcast %183 : vector<4x1xf32> to vector<4x256xf32>
    %185 = vector.broadcast %181 : vector<1x256xf32> to vector<4x256xf32>
    %186 = arith.mulf %184, %185 : vector<4x256xf32>
    %187 = arith.addf %180, %186 : vector<4x256xf32>
    %188 = vector.extract_strided_slice %166 {offsets = [3, 0], sizes = [1, 256], strides = [1, 1]} : vector<4x256xf32> to vector<1x256xf32>
    %c23 = arith.constant 23 : index
    %c0_61 = arith.constant 0 : index
    %c0_62 = arith.constant 0 : index
    %189 = vector.load %arg2[%c23, %c0_61, %c0_62] : memref<36x4x1xf32, #tpu.memory_space<vmem>>, vector<1x4x1xf32>
    %190 = vector.shape_cast %189 : vector<1x4x1xf32> to vector<4x1xf32>
    %191 = vector.broadcast %190 : vector<4x1xf32> to vector<4x256xf32>
    %192 = vector.broadcast %188 : vector<1x256xf32> to vector<4x256xf32>
    %193 = arith.mulf %191, %192 : vector<4x256xf32>
    %194 = arith.addf %187, %193 : vector<4x256xf32>
    %c241_i32 = arith.constant 241 : i32
    %195 = tpu.dynamic_rotate %3 by %c241_i32 dim 1 : vector<4x256xf32>, i32 -> vector<4x256xf32>
    %c6_63 = arith.constant 6 : index
    %c0_64 = arith.constant 0 : index
    %196 = vector.load %arg6[%c6_63, %c0_64] : memref<9x256xf32, #tpu.memory_space<vmem>>, vector<1x256xf32>
    %197 = vector.broadcast %196 : vector<1x256xf32> to vector<4x256xf32>
    %198 = arith.mulf %195, %197 : vector<4x256xf32>
    %199 = vector.extract_strided_slice %198 {offsets = [0, 0], sizes = [1, 256], strides = [1, 1]} : vector<4x256xf32> to vector<1x256xf32>
    %c24 = arith.constant 24 : index
    %c0_65 = arith.constant 0 : index
    %c0_66 = arith.constant 0 : index
    %200 = vector.load %arg2[%c24, %c0_65, %c0_66] : memref<36x4x1xf32, #tpu.memory_space<vmem>>, vector<1x4x1xf32>
    %201 = vector.shape_cast %200 : vector<1x4x1xf32> to vector<4x1xf32>
    %202 = vector.broadcast %201 : vector<4x1xf32> to vector<4x256xf32>
    %203 = vector.broadcast %199 : vector<1x256xf32> to vector<4x256xf32>
    %204 = arith.mulf %202, %203 : vector<4x256xf32>
    %205 = arith.addf %194, %204 : vector<4x256xf32>
    %206 = vector.extract_strided_slice %198 {offsets = [1, 0], sizes = [1, 256], strides = [1, 1]} : vector<4x256xf32> to vector<1x256xf32>
    %c25 = arith.constant 25 : index
    %c0_67 = arith.constant 0 : index
    %c0_68 = arith.constant 0 : index
    %207 = vector.load %arg2[%c25, %c0_67, %c0_68] : memref<36x4x1xf32, #tpu.memory_space<vmem>>, vector<1x4x1xf32>
    %208 = vector.shape_cast %207 : vector<1x4x1xf32> to vector<4x1xf32>
    %209 = vector.broadcast %208 : vector<4x1xf32> to vector<4x256xf32>
    %210 = vector.broadcast %206 : vector<1x256xf32> to vector<4x256xf32>
    %211 = arith.mulf %209, %210 : vector<4x256xf32>
    %212 = arith.addf %205, %211 : vector<4x256xf32>
    %213 = vector.extract_strided_slice %198 {offsets = [2, 0], sizes = [1, 256], strides = [1, 1]} : vector<4x256xf32> to vector<1x256xf32>
    %c26 = arith.constant 26 : index
    %c0_69 = arith.constant 0 : index
    %c0_70 = arith.constant 0 : index
    %214 = vector.load %arg2[%c26, %c0_69, %c0_70] : memref<36x4x1xf32, #tpu.memory_space<vmem>>, vector<1x4x1xf32>
    %215 = vector.shape_cast %214 : vector<1x4x1xf32> to vector<4x1xf32>
    %216 = vector.broadcast %215 : vector<4x1xf32> to vector<4x256xf32>
    %217 = vector.broadcast %213 : vector<1x256xf32> to vector<4x256xf32>
    %218 = arith.mulf %216, %217 : vector<4x256xf32>
    %219 = arith.addf %212, %218 : vector<4x256xf32>
    %220 = vector.extract_strided_slice %198 {offsets = [3, 0], sizes = [1, 256], strides = [1, 1]} : vector<4x256xf32> to vector<1x256xf32>
    %c27 = arith.constant 27 : index
    %c0_71 = arith.constant 0 : index
    %c0_72 = arith.constant 0 : index
    %221 = vector.load %arg2[%c27, %c0_71, %c0_72] : memref<36x4x1xf32, #tpu.memory_space<vmem>>, vector<1x4x1xf32>
    %222 = vector.shape_cast %221 : vector<1x4x1xf32> to vector<4x1xf32>
    %223 = vector.broadcast %222 : vector<4x1xf32> to vector<4x256xf32>
    %224 = vector.broadcast %220 : vector<1x256xf32> to vector<4x256xf32>
    %225 = arith.mulf %223, %224 : vector<4x256xf32>
    %226 = arith.addf %219, %225 : vector<4x256xf32>
    %c240_i32 = arith.constant 240 : i32
    %227 = tpu.dynamic_rotate %3 by %c240_i32 dim 1 : vector<4x256xf32>, i32 -> vector<4x256xf32>
    %c7_73 = arith.constant 7 : index
    %c0_74 = arith.constant 0 : index
    %228 = vector.load %arg6[%c7_73, %c0_74] : memref<9x256xf32, #tpu.memory_space<vmem>>, vector<1x256xf32>
    %229 = vector.broadcast %228 : vector<1x256xf32> to vector<4x256xf32>
    %230 = arith.mulf %227, %229 : vector<4x256xf32>
    %231 = vector.extract_strided_slice %230 {offsets = [0, 0], sizes = [1, 256], strides = [1, 1]} : vector<4x256xf32> to vector<1x256xf32>
    %c28 = arith.constant 28 : index
    %c0_75 = arith.constant 0 : index
    %c0_76 = arith.constant 0 : index
    %232 = vector.load %arg2[%c28, %c0_75, %c0_76] : memref<36x4x1xf32, #tpu.memory_space<vmem>>, vector<1x4x1xf32>
    %233 = vector.shape_cast %232 : vector<1x4x1xf32> to vector<4x1xf32>
    %234 = vector.broadcast %233 : vector<4x1xf32> to vector<4x256xf32>
    %235 = vector.broadcast %231 : vector<1x256xf32> to vector<4x256xf32>
    %236 = arith.mulf %234, %235 : vector<4x256xf32>
    %237 = arith.addf %226, %236 : vector<4x256xf32>
    %238 = vector.extract_strided_slice %230 {offsets = [1, 0], sizes = [1, 256], strides = [1, 1]} : vector<4x256xf32> to vector<1x256xf32>
    %c29 = arith.constant 29 : index
    %c0_77 = arith.constant 0 : index
    %c0_78 = arith.constant 0 : index
    %239 = vector.load %arg2[%c29, %c0_77, %c0_78] : memref<36x4x1xf32, #tpu.memory_space<vmem>>, vector<1x4x1xf32>
    %240 = vector.shape_cast %239 : vector<1x4x1xf32> to vector<4x1xf32>
    %241 = vector.broadcast %240 : vector<4x1xf32> to vector<4x256xf32>
    %242 = vector.broadcast %238 : vector<1x256xf32> to vector<4x256xf32>
    %243 = arith.mulf %241, %242 : vector<4x256xf32>
    %244 = arith.addf %237, %243 : vector<4x256xf32>
    %245 = vector.extract_strided_slice %230 {offsets = [2, 0], sizes = [1, 256], strides = [1, 1]} : vector<4x256xf32> to vector<1x256xf32>
    %c30 = arith.constant 30 : index
    %c0_79 = arith.constant 0 : index
    %c0_80 = arith.constant 0 : index
    %246 = vector.load %arg2[%c30, %c0_79, %c0_80] : memref<36x4x1xf32, #tpu.memory_space<vmem>>, vector<1x4x1xf32>
    %247 = vector.shape_cast %246 : vector<1x4x1xf32> to vector<4x1xf32>
    %248 = vector.broadcast %247 : vector<4x1xf32> to vector<4x256xf32>
    %249 = vector.broadcast %245 : vector<1x256xf32> to vector<4x256xf32>
    %250 = arith.mulf %248, %249 : vector<4x256xf32>
    %251 = arith.addf %244, %250 : vector<4x256xf32>
    %252 = vector.extract_strided_slice %230 {offsets = [3, 0], sizes = [1, 256], strides = [1, 1]} : vector<4x256xf32> to vector<1x256xf32>
    %c31 = arith.constant 31 : index
    %c0_81 = arith.constant 0 : index
    %c0_82 = arith.constant 0 : index
    %253 = vector.load %arg2[%c31, %c0_81, %c0_82] : memref<36x4x1xf32, #tpu.memory_space<vmem>>, vector<1x4x1xf32>
    %254 = vector.shape_cast %253 : vector<1x4x1xf32> to vector<4x1xf32>
    %255 = vector.broadcast %254 : vector<4x1xf32> to vector<4x256xf32>
    %256 = vector.broadcast %252 : vector<1x256xf32> to vector<4x256xf32>
    %257 = arith.mulf %255, %256 : vector<4x256xf32>
    %258 = arith.addf %251, %257 : vector<4x256xf32>
    %c239_i32 = arith.constant 239 : i32
    %259 = tpu.dynamic_rotate %3 by %c239_i32 dim 1 : vector<4x256xf32>, i32 -> vector<4x256xf32>
    %c8_83 = arith.constant 8 : index
    %c0_84 = arith.constant 0 : index
    %260 = vector.load %arg6[%c8_83, %c0_84] : memref<9x256xf32, #tpu.memory_space<vmem>>, vector<1x256xf32>
    %261 = vector.broadcast %260 : vector<1x256xf32> to vector<4x256xf32>
    %262 = arith.mulf %259, %261 : vector<4x256xf32>
    %263 = vector.extract_strided_slice %262 {offsets = [0, 0], sizes = [1, 256], strides = [1, 1]} : vector<4x256xf32> to vector<1x256xf32>
    %c32 = arith.constant 32 : index
    %c0_85 = arith.constant 0 : index
    %c0_86 = arith.constant 0 : index
    %264 = vector.load %arg2[%c32, %c0_85, %c0_86] : memref<36x4x1xf32, #tpu.memory_space<vmem>>, vector<1x4x1xf32>
    %265 = vector.shape_cast %264 : vector<1x4x1xf32> to vector<4x1xf32>
    %266 = vector.broadcast %265 : vector<4x1xf32> to vector<4x256xf32>
    %267 = vector.broadcast %263 : vector<1x256xf32> to vector<4x256xf32>
    %268 = arith.mulf %266, %267 : vector<4x256xf32>
    %269 = arith.addf %258, %268 : vector<4x256xf32>
    %270 = vector.extract_strided_slice %262 {offsets = [1, 0], sizes = [1, 256], strides = [1, 1]} : vector<4x256xf32> to vector<1x256xf32>
    %c33 = arith.constant 33 : index
    %c0_87 = arith.constant 0 : index
    %c0_88 = arith.constant 0 : index
    %271 = vector.load %arg2[%c33, %c0_87, %c0_88] : memref<36x4x1xf32, #tpu.memory_space<vmem>>, vector<1x4x1xf32>
    %272 = vector.shape_cast %271 : vector<1x4x1xf32> to vector<4x1xf32>
    %273 = vector.broadcast %272 : vector<4x1xf32> to vector<4x256xf32>
    %274 = vector.broadcast %270 : vector<1x256xf32> to vector<4x256xf32>
    %275 = arith.mulf %273, %274 : vector<4x256xf32>
    %276 = arith.addf %269, %275 : vector<4x256xf32>
    %277 = vector.extract_strided_slice %262 {offsets = [2, 0], sizes = [1, 256], strides = [1, 1]} : vector<4x256xf32> to vector<1x256xf32>
    %c34 = arith.constant 34 : index
    %c0_89 = arith.constant 0 : index
    %c0_90 = arith.constant 0 : index
    %278 = vector.load %arg2[%c34, %c0_89, %c0_90] : memref<36x4x1xf32, #tpu.memory_space<vmem>>, vector<1x4x1xf32>
    %279 = vector.shape_cast %278 : vector<1x4x1xf32> to vector<4x1xf32>
    %280 = vector.broadcast %279 : vector<4x1xf32> to vector<4x256xf32>
    %281 = vector.broadcast %277 : vector<1x256xf32> to vector<4x256xf32>
    %282 = arith.mulf %280, %281 : vector<4x256xf32>
    %283 = arith.addf %276, %282 : vector<4x256xf32>
    %284 = vector.extract_strided_slice %262 {offsets = [3, 0], sizes = [1, 256], strides = [1, 1]} : vector<4x256xf32> to vector<1x256xf32>
    %c35 = arith.constant 35 : index
    %c0_91 = arith.constant 0 : index
    %c0_92 = arith.constant 0 : index
    %285 = vector.load %arg2[%c35, %c0_91, %c0_92] : memref<36x4x1xf32, #tpu.memory_space<vmem>>, vector<1x4x1xf32>
    %286 = vector.shape_cast %285 : vector<1x4x1xf32> to vector<4x1xf32>
    %287 = vector.broadcast %286 : vector<4x1xf32> to vector<4x256xf32>
    %288 = vector.broadcast %284 : vector<1x256xf32> to vector<4x256xf32>
    %289 = arith.mulf %287, %288 : vector<4x256xf32>
    %290 = arith.addf %283, %289 : vector<4x256xf32>
    %cst_93 = arith.constant 0.000000e+00 : f32
    %291 = vector.broadcast %cst_93 : f32 to vector<4x256xf32>
    %292 = arith.maximumf %290, %291 : vector<4x256xf32>
    %c0_94 = arith.constant 0 : index
    %c0_95 = arith.constant 0 : index
    %293 = vector.load %arg5[%c0_94, %c0_95] : memref<4x1xf32, #tpu.memory_space<vmem>>, vector<4x1xf32>
    %294 = vector.shape_cast %293 : vector<4x1xf32> to vector<4x1xf32>
    %295 = vector.broadcast %294 : vector<4x1xf32> to vector<4x256xf32>
    %c17_i32_96 = arith.constant 17 : i32
    %296 = tpu.dynamic_rotate %292 by %c17_i32_96 dim 1 : vector<4x256xf32>, i32 -> vector<4x256xf32>
    %c0_97 = arith.constant 0 : index
    %c0_98 = arith.constant 0 : index
    %297 = vector.load %arg6[%c0_97, %c0_98] : memref<9x256xf32, #tpu.memory_space<vmem>>, vector<1x256xf32>
    %298 = vector.broadcast %297 : vector<1x256xf32> to vector<4x256xf32>
    %299 = arith.mulf %296, %298 : vector<4x256xf32>
    %300 = vector.extract_strided_slice %299 {offsets = [0, 0], sizes = [1, 256], strides = [1, 1]} : vector<4x256xf32> to vector<1x256xf32>
    %c0_99 = arith.constant 0 : index
    %c0_100 = arith.constant 0 : index
    %c0_101 = arith.constant 0 : index
    %301 = vector.load %arg4[%c0_99, %c0_100, %c0_101] : memref<36x4x1xf32, #tpu.memory_space<vmem>>, vector<1x4x1xf32>
    %302 = vector.shape_cast %301 : vector<1x4x1xf32> to vector<4x1xf32>
    %303 = vector.broadcast %302 : vector<4x1xf32> to vector<4x256xf32>
    %304 = vector.broadcast %300 : vector<1x256xf32> to vector<4x256xf32>
    %305 = arith.mulf %303, %304 : vector<4x256xf32>
    %306 = arith.addf %295, %305 : vector<4x256xf32>
    %307 = vector.extract_strided_slice %299 {offsets = [1, 0], sizes = [1, 256], strides = [1, 1]} : vector<4x256xf32> to vector<1x256xf32>
    %c1_102 = arith.constant 1 : index
    %c0_103 = arith.constant 0 : index
    %c0_104 = arith.constant 0 : index
    %308 = vector.load %arg4[%c1_102, %c0_103, %c0_104] : memref<36x4x1xf32, #tpu.memory_space<vmem>>, vector<1x4x1xf32>
    %309 = vector.shape_cast %308 : vector<1x4x1xf32> to vector<4x1xf32>
    %310 = vector.broadcast %309 : vector<4x1xf32> to vector<4x256xf32>
    %311 = vector.broadcast %307 : vector<1x256xf32> to vector<4x256xf32>
    %312 = arith.mulf %310, %311 : vector<4x256xf32>
    %313 = arith.addf %306, %312 : vector<4x256xf32>
    %314 = vector.extract_strided_slice %299 {offsets = [2, 0], sizes = [1, 256], strides = [1, 1]} : vector<4x256xf32> to vector<1x256xf32>
    %c2_105 = arith.constant 2 : index
    %c0_106 = arith.constant 0 : index
    %c0_107 = arith.constant 0 : index
    %315 = vector.load %arg4[%c2_105, %c0_106, %c0_107] : memref<36x4x1xf32, #tpu.memory_space<vmem>>, vector<1x4x1xf32>
    %316 = vector.shape_cast %315 : vector<1x4x1xf32> to vector<4x1xf32>
    %317 = vector.broadcast %316 : vector<4x1xf32> to vector<4x256xf32>
    %318 = vector.broadcast %314 : vector<1x256xf32> to vector<4x256xf32>
    %319 = arith.mulf %317, %318 : vector<4x256xf32>
    %320 = arith.addf %313, %319 : vector<4x256xf32>
    %321 = vector.extract_strided_slice %299 {offsets = [3, 0], sizes = [1, 256], strides = [1, 1]} : vector<4x256xf32> to vector<1x256xf32>
    %c3_108 = arith.constant 3 : index
    %c0_109 = arith.constant 0 : index
    %c0_110 = arith.constant 0 : index
    %322 = vector.load %arg4[%c3_108, %c0_109, %c0_110] : memref<36x4x1xf32, #tpu.memory_space<vmem>>, vector<1x4x1xf32>
    %323 = vector.shape_cast %322 : vector<1x4x1xf32> to vector<4x1xf32>
    %324 = vector.broadcast %323 : vector<4x1xf32> to vector<4x256xf32>
    %325 = vector.broadcast %321 : vector<1x256xf32> to vector<4x256xf32>
    %326 = arith.mulf %324, %325 : vector<4x256xf32>
    %327 = arith.addf %320, %326 : vector<4x256xf32>
    %c16_i32_111 = arith.constant 16 : i32
    %328 = tpu.dynamic_rotate %292 by %c16_i32_111 dim 1 : vector<4x256xf32>, i32 -> vector<4x256xf32>
    %c1_112 = arith.constant 1 : index
    %c0_113 = arith.constant 0 : index
    %329 = vector.load %arg6[%c1_112, %c0_113] : memref<9x256xf32, #tpu.memory_space<vmem>>, vector<1x256xf32>
    %330 = vector.broadcast %329 : vector<1x256xf32> to vector<4x256xf32>
    %331 = arith.mulf %328, %330 : vector<4x256xf32>
    %332 = vector.extract_strided_slice %331 {offsets = [0, 0], sizes = [1, 256], strides = [1, 1]} : vector<4x256xf32> to vector<1x256xf32>
    %c4_114 = arith.constant 4 : index
    %c0_115 = arith.constant 0 : index
    %c0_116 = arith.constant 0 : index
    %333 = vector.load %arg4[%c4_114, %c0_115, %c0_116] : memref<36x4x1xf32, #tpu.memory_space<vmem>>, vector<1x4x1xf32>
    %334 = vector.shape_cast %333 : vector<1x4x1xf32> to vector<4x1xf32>
    %335 = vector.broadcast %334 : vector<4x1xf32> to vector<4x256xf32>
    %336 = vector.broadcast %332 : vector<1x256xf32> to vector<4x256xf32>
    %337 = arith.mulf %335, %336 : vector<4x256xf32>
    %338 = arith.addf %327, %337 : vector<4x256xf32>
    %339 = vector.extract_strided_slice %331 {offsets = [1, 0], sizes = [1, 256], strides = [1, 1]} : vector<4x256xf32> to vector<1x256xf32>
    %c5_117 = arith.constant 5 : index
    %c0_118 = arith.constant 0 : index
    %c0_119 = arith.constant 0 : index
    %340 = vector.load %arg4[%c5_117, %c0_118, %c0_119] : memref<36x4x1xf32, #tpu.memory_space<vmem>>, vector<1x4x1xf32>
    %341 = vector.shape_cast %340 : vector<1x4x1xf32> to vector<4x1xf32>
    %342 = vector.broadcast %341 : vector<4x1xf32> to vector<4x256xf32>
    %343 = vector.broadcast %339 : vector<1x256xf32> to vector<4x256xf32>
    %344 = arith.mulf %342, %343 : vector<4x256xf32>
    %345 = arith.addf %338, %344 : vector<4x256xf32>
    %346 = vector.extract_strided_slice %331 {offsets = [2, 0], sizes = [1, 256], strides = [1, 1]} : vector<4x256xf32> to vector<1x256xf32>
    %c6_120 = arith.constant 6 : index
    %c0_121 = arith.constant 0 : index
    %c0_122 = arith.constant 0 : index
    %347 = vector.load %arg4[%c6_120, %c0_121, %c0_122] : memref<36x4x1xf32, #tpu.memory_space<vmem>>, vector<1x4x1xf32>
    %348 = vector.shape_cast %347 : vector<1x4x1xf32> to vector<4x1xf32>
    %349 = vector.broadcast %348 : vector<4x1xf32> to vector<4x256xf32>
    %350 = vector.broadcast %346 : vector<1x256xf32> to vector<4x256xf32>
    %351 = arith.mulf %349, %350 : vector<4x256xf32>
    %352 = arith.addf %345, %351 : vector<4x256xf32>
    %353 = vector.extract_strided_slice %331 {offsets = [3, 0], sizes = [1, 256], strides = [1, 1]} : vector<4x256xf32> to vector<1x256xf32>
    %c7_123 = arith.constant 7 : index
    %c0_124 = arith.constant 0 : index
    %c0_125 = arith.constant 0 : index
    %354 = vector.load %arg4[%c7_123, %c0_124, %c0_125] : memref<36x4x1xf32, #tpu.memory_space<vmem>>, vector<1x4x1xf32>
    %355 = vector.shape_cast %354 : vector<1x4x1xf32> to vector<4x1xf32>
    %356 = vector.broadcast %355 : vector<4x1xf32> to vector<4x256xf32>
    %357 = vector.broadcast %353 : vector<1x256xf32> to vector<4x256xf32>
    %358 = arith.mulf %356, %357 : vector<4x256xf32>
    %359 = arith.addf %352, %358 : vector<4x256xf32>
    %c15_i32_126 = arith.constant 15 : i32
    %360 = tpu.dynamic_rotate %292 by %c15_i32_126 dim 1 : vector<4x256xf32>, i32 -> vector<4x256xf32>
    %c2_127 = arith.constant 2 : index
    %c0_128 = arith.constant 0 : index
    %361 = vector.load %arg6[%c2_127, %c0_128] : memref<9x256xf32, #tpu.memory_space<vmem>>, vector<1x256xf32>
    %362 = vector.broadcast %361 : vector<1x256xf32> to vector<4x256xf32>
    %363 = arith.mulf %360, %362 : vector<4x256xf32>
    %364 = vector.extract_strided_slice %363 {offsets = [0, 0], sizes = [1, 256], strides = [1, 1]} : vector<4x256xf32> to vector<1x256xf32>
    %c8_129 = arith.constant 8 : index
    %c0_130 = arith.constant 0 : index
    %c0_131 = arith.constant 0 : index
    %365 = vector.load %arg4[%c8_129, %c0_130, %c0_131] : memref<36x4x1xf32, #tpu.memory_space<vmem>>, vector<1x4x1xf32>
    %366 = vector.shape_cast %365 : vector<1x4x1xf32> to vector<4x1xf32>
    %367 = vector.broadcast %366 : vector<4x1xf32> to vector<4x256xf32>
    %368 = vector.broadcast %364 : vector<1x256xf32> to vector<4x256xf32>
    %369 = arith.mulf %367, %368 : vector<4x256xf32>
    %370 = arith.addf %359, %369 : vector<4x256xf32>
    %371 = vector.extract_strided_slice %363 {offsets = [1, 0], sizes = [1, 256], strides = [1, 1]} : vector<4x256xf32> to vector<1x256xf32>
    %c9_132 = arith.constant 9 : index
    %c0_133 = arith.constant 0 : index
    %c0_134 = arith.constant 0 : index
    %372 = vector.load %arg4[%c9_132, %c0_133, %c0_134] : memref<36x4x1xf32, #tpu.memory_space<vmem>>, vector<1x4x1xf32>
    %373 = vector.shape_cast %372 : vector<1x4x1xf32> to vector<4x1xf32>
    %374 = vector.broadcast %373 : vector<4x1xf32> to vector<4x256xf32>
    %375 = vector.broadcast %371 : vector<1x256xf32> to vector<4x256xf32>
    %376 = arith.mulf %374, %375 : vector<4x256xf32>
    %377 = arith.addf %370, %376 : vector<4x256xf32>
    %378 = vector.extract_strided_slice %363 {offsets = [2, 0], sizes = [1, 256], strides = [1, 1]} : vector<4x256xf32> to vector<1x256xf32>
    %c10_135 = arith.constant 10 : index
    %c0_136 = arith.constant 0 : index
    %c0_137 = arith.constant 0 : index
    %379 = vector.load %arg4[%c10_135, %c0_136, %c0_137] : memref<36x4x1xf32, #tpu.memory_space<vmem>>, vector<1x4x1xf32>
    %380 = vector.shape_cast %379 : vector<1x4x1xf32> to vector<4x1xf32>
    %381 = vector.broadcast %380 : vector<4x1xf32> to vector<4x256xf32>
    %382 = vector.broadcast %378 : vector<1x256xf32> to vector<4x256xf32>
    %383 = arith.mulf %381, %382 : vector<4x256xf32>
    %384 = arith.addf %377, %383 : vector<4x256xf32>
    %385 = vector.extract_strided_slice %363 {offsets = [3, 0], sizes = [1, 256], strides = [1, 1]} : vector<4x256xf32> to vector<1x256xf32>
    %c11_138 = arith.constant 11 : index
    %c0_139 = arith.constant 0 : index
    %c0_140 = arith.constant 0 : index
    %386 = vector.load %arg4[%c11_138, %c0_139, %c0_140] : memref<36x4x1xf32, #tpu.memory_space<vmem>>, vector<1x4x1xf32>
    %387 = vector.shape_cast %386 : vector<1x4x1xf32> to vector<4x1xf32>
    %388 = vector.broadcast %387 : vector<4x1xf32> to vector<4x256xf32>
    %389 = vector.broadcast %385 : vector<1x256xf32> to vector<4x256xf32>
    %390 = arith.mulf %388, %389 : vector<4x256xf32>
    %391 = arith.addf %384, %390 : vector<4x256xf32>
    %c1_i32_141 = arith.constant 1 : i32
    %392 = tpu.dynamic_rotate %292 by %c1_i32_141 dim 1 : vector<4x256xf32>, i32 -> vector<4x256xf32>
    %c3_142 = arith.constant 3 : index
    %c0_143 = arith.constant 0 : index
    %393 = vector.load %arg6[%c3_142, %c0_143] : memref<9x256xf32, #tpu.memory_space<vmem>>, vector<1x256xf32>
    %394 = vector.broadcast %393 : vector<1x256xf32> to vector<4x256xf32>
    %395 = arith.mulf %392, %394 : vector<4x256xf32>
    %396 = vector.extract_strided_slice %395 {offsets = [0, 0], sizes = [1, 256], strides = [1, 1]} : vector<4x256xf32> to vector<1x256xf32>
    %c12_144 = arith.constant 12 : index
    %c0_145 = arith.constant 0 : index
    %c0_146 = arith.constant 0 : index
    %397 = vector.load %arg4[%c12_144, %c0_145, %c0_146] : memref<36x4x1xf32, #tpu.memory_space<vmem>>, vector<1x4x1xf32>
    %398 = vector.shape_cast %397 : vector<1x4x1xf32> to vector<4x1xf32>
    %399 = vector.broadcast %398 : vector<4x1xf32> to vector<4x256xf32>
    %400 = vector.broadcast %396 : vector<1x256xf32> to vector<4x256xf32>
    %401 = arith.mulf %399, %400 : vector<4x256xf32>
    %402 = arith.addf %391, %401 : vector<4x256xf32>
    %403 = vector.extract_strided_slice %395 {offsets = [1, 0], sizes = [1, 256], strides = [1, 1]} : vector<4x256xf32> to vector<1x256xf32>
    %c13_147 = arith.constant 13 : index
    %c0_148 = arith.constant 0 : index
    %c0_149 = arith.constant 0 : index
    %404 = vector.load %arg4[%c13_147, %c0_148, %c0_149] : memref<36x4x1xf32, #tpu.memory_space<vmem>>, vector<1x4x1xf32>
    %405 = vector.shape_cast %404 : vector<1x4x1xf32> to vector<4x1xf32>
    %406 = vector.broadcast %405 : vector<4x1xf32> to vector<4x256xf32>
    %407 = vector.broadcast %403 : vector<1x256xf32> to vector<4x256xf32>
    %408 = arith.mulf %406, %407 : vector<4x256xf32>
    %409 = arith.addf %402, %408 : vector<4x256xf32>
    %410 = vector.extract_strided_slice %395 {offsets = [2, 0], sizes = [1, 256], strides = [1, 1]} : vector<4x256xf32> to vector<1x256xf32>
    %c14_150 = arith.constant 14 : index
    %c0_151 = arith.constant 0 : index
    %c0_152 = arith.constant 0 : index
    %411 = vector.load %arg4[%c14_150, %c0_151, %c0_152] : memref<36x4x1xf32, #tpu.memory_space<vmem>>, vector<1x4x1xf32>
    %412 = vector.shape_cast %411 : vector<1x4x1xf32> to vector<4x1xf32>
    %413 = vector.broadcast %412 : vector<4x1xf32> to vector<4x256xf32>
    %414 = vector.broadcast %410 : vector<1x256xf32> to vector<4x256xf32>
    %415 = arith.mulf %413, %414 : vector<4x256xf32>
    %416 = arith.addf %409, %415 : vector<4x256xf32>
    %417 = vector.extract_strided_slice %395 {offsets = [3, 0], sizes = [1, 256], strides = [1, 1]} : vector<4x256xf32> to vector<1x256xf32>
    %c15_153 = arith.constant 15 : index
    %c0_154 = arith.constant 0 : index
    %c0_155 = arith.constant 0 : index
    %418 = vector.load %arg4[%c15_153, %c0_154, %c0_155] : memref<36x4x1xf32, #tpu.memory_space<vmem>>, vector<1x4x1xf32>
    %419 = vector.shape_cast %418 : vector<1x4x1xf32> to vector<4x1xf32>
    %420 = vector.broadcast %419 : vector<4x1xf32> to vector<4x256xf32>
    %421 = vector.broadcast %417 : vector<1x256xf32> to vector<4x256xf32>
    %422 = arith.mulf %420, %421 : vector<4x256xf32>
    %423 = arith.addf %416, %422 : vector<4x256xf32>
    %424 = vector.extract_strided_slice %292 {offsets = [0, 0], sizes = [1, 256], strides = [1, 1]} : vector<4x256xf32> to vector<1x256xf32>
    %c16_156 = arith.constant 16 : index
    %c0_157 = arith.constant 0 : index
    %c0_158 = arith.constant 0 : index
    %425 = vector.load %arg4[%c16_156, %c0_157, %c0_158] : memref<36x4x1xf32, #tpu.memory_space<vmem>>, vector<1x4x1xf32>
    %426 = vector.shape_cast %425 : vector<1x4x1xf32> to vector<4x1xf32>
    %427 = vector.broadcast %426 : vector<4x1xf32> to vector<4x256xf32>
    %428 = vector.broadcast %424 : vector<1x256xf32> to vector<4x256xf32>
    %429 = arith.mulf %427, %428 : vector<4x256xf32>
    %430 = arith.addf %423, %429 : vector<4x256xf32>
    %431 = vector.extract_strided_slice %292 {offsets = [1, 0], sizes = [1, 256], strides = [1, 1]} : vector<4x256xf32> to vector<1x256xf32>
    %c17_159 = arith.constant 17 : index
    %c0_160 = arith.constant 0 : index
    %c0_161 = arith.constant 0 : index
    %432 = vector.load %arg4[%c17_159, %c0_160, %c0_161] : memref<36x4x1xf32, #tpu.memory_space<vmem>>, vector<1x4x1xf32>
    %433 = vector.shape_cast %432 : vector<1x4x1xf32> to vector<4x1xf32>
    %434 = vector.broadcast %433 : vector<4x1xf32> to vector<4x256xf32>
    %435 = vector.broadcast %431 : vector<1x256xf32> to vector<4x256xf32>
    %436 = arith.mulf %434, %435 : vector<4x256xf32>
    %437 = arith.addf %430, %436 : vector<4x256xf32>
    %438 = vector.extract_strided_slice %292 {offsets = [2, 0], sizes = [1, 256], strides = [1, 1]} : vector<4x256xf32> to vector<1x256xf32>
    %c18_162 = arith.constant 18 : index
    %c0_163 = arith.constant 0 : index
    %c0_164 = arith.constant 0 : index
    %439 = vector.load %arg4[%c18_162, %c0_163, %c0_164] : memref<36x4x1xf32, #tpu.memory_space<vmem>>, vector<1x4x1xf32>
    %440 = vector.shape_cast %439 : vector<1x4x1xf32> to vector<4x1xf32>
    %441 = vector.broadcast %440 : vector<4x1xf32> to vector<4x256xf32>
    %442 = vector.broadcast %438 : vector<1x256xf32> to vector<4x256xf32>
    %443 = arith.mulf %441, %442 : vector<4x256xf32>
    %444 = arith.addf %437, %443 : vector<4x256xf32>
    %445 = vector.extract_strided_slice %292 {offsets = [3, 0], sizes = [1, 256], strides = [1, 1]} : vector<4x256xf32> to vector<1x256xf32>
    %c19_165 = arith.constant 19 : index
    %c0_166 = arith.constant 0 : index
    %c0_167 = arith.constant 0 : index
    %446 = vector.load %arg4[%c19_165, %c0_166, %c0_167] : memref<36x4x1xf32, #tpu.memory_space<vmem>>, vector<1x4x1xf32>
    %447 = vector.shape_cast %446 : vector<1x4x1xf32> to vector<4x1xf32>
    %448 = vector.broadcast %447 : vector<4x1xf32> to vector<4x256xf32>
    %449 = vector.broadcast %445 : vector<1x256xf32> to vector<4x256xf32>
    %450 = arith.mulf %448, %449 : vector<4x256xf32>
    %451 = arith.addf %444, %450 : vector<4x256xf32>
    %c255_i32_168 = arith.constant 255 : i32
    %452 = tpu.dynamic_rotate %292 by %c255_i32_168 dim 1 : vector<4x256xf32>, i32 -> vector<4x256xf32>
    %c5_169 = arith.constant 5 : index
    %c0_170 = arith.constant 0 : index
    %453 = vector.load %arg6[%c5_169, %c0_170] : memref<9x256xf32, #tpu.memory_space<vmem>>, vector<1x256xf32>
    %454 = vector.broadcast %453 : vector<1x256xf32> to vector<4x256xf32>
    %455 = arith.mulf %452, %454 : vector<4x256xf32>
    %456 = vector.extract_strided_slice %455 {offsets = [0, 0], sizes = [1, 256], strides = [1, 1]} : vector<4x256xf32> to vector<1x256xf32>
    %c20_171 = arith.constant 20 : index
    %c0_172 = arith.constant 0 : index
    %c0_173 = arith.constant 0 : index
    %457 = vector.load %arg4[%c20_171, %c0_172, %c0_173] : memref<36x4x1xf32, #tpu.memory_space<vmem>>, vector<1x4x1xf32>
    %458 = vector.shape_cast %457 : vector<1x4x1xf32> to vector<4x1xf32>
    %459 = vector.broadcast %458 : vector<4x1xf32> to vector<4x256xf32>
    %460 = vector.broadcast %456 : vector<1x256xf32> to vector<4x256xf32>
    %461 = arith.mulf %459, %460 : vector<4x256xf32>
    %462 = arith.addf %451, %461 : vector<4x256xf32>
    %463 = vector.extract_strided_slice %455 {offsets = [1, 0], sizes = [1, 256], strides = [1, 1]} : vector<4x256xf32> to vector<1x256xf32>
    %c21_174 = arith.constant 21 : index
    %c0_175 = arith.constant 0 : index
    %c0_176 = arith.constant 0 : index
    %464 = vector.load %arg4[%c21_174, %c0_175, %c0_176] : memref<36x4x1xf32, #tpu.memory_space<vmem>>, vector<1x4x1xf32>
    %465 = vector.shape_cast %464 : vector<1x4x1xf32> to vector<4x1xf32>
    %466 = vector.broadcast %465 : vector<4x1xf32> to vector<4x256xf32>
    %467 = vector.broadcast %463 : vector<1x256xf32> to vector<4x256xf32>
    %468 = arith.mulf %466, %467 : vector<4x256xf32>
    %469 = arith.addf %462, %468 : vector<4x256xf32>
    %470 = vector.extract_strided_slice %455 {offsets = [2, 0], sizes = [1, 256], strides = [1, 1]} : vector<4x256xf32> to vector<1x256xf32>
    %c22_177 = arith.constant 22 : index
    %c0_178 = arith.constant 0 : index
    %c0_179 = arith.constant 0 : index
    %471 = vector.load %arg4[%c22_177, %c0_178, %c0_179] : memref<36x4x1xf32, #tpu.memory_space<vmem>>, vector<1x4x1xf32>
    %472 = vector.shape_cast %471 : vector<1x4x1xf32> to vector<4x1xf32>
    %473 = vector.broadcast %472 : vector<4x1xf32> to vector<4x256xf32>
    %474 = vector.broadcast %470 : vector<1x256xf32> to vector<4x256xf32>
    %475 = arith.mulf %473, %474 : vector<4x256xf32>
    %476 = arith.addf %469, %475 : vector<4x256xf32>
    %477 = vector.extract_strided_slice %455 {offsets = [3, 0], sizes = [1, 256], strides = [1, 1]} : vector<4x256xf32> to vector<1x256xf32>
    %c23_180 = arith.constant 23 : index
    %c0_181 = arith.constant 0 : index
    %c0_182 = arith.constant 0 : index
    %478 = vector.load %arg4[%c23_180, %c0_181, %c0_182] : memref<36x4x1xf32, #tpu.memory_space<vmem>>, vector<1x4x1xf32>
    %479 = vector.shape_cast %478 : vector<1x4x1xf32> to vector<4x1xf32>
    %480 = vector.broadcast %479 : vector<4x1xf32> to vector<4x256xf32>
    %481 = vector.broadcast %477 : vector<1x256xf32> to vector<4x256xf32>
    %482 = arith.mulf %480, %481 : vector<4x256xf32>
    %483 = arith.addf %476, %482 : vector<4x256xf32>
    %c241_i32_183 = arith.constant 241 : i32
    %484 = tpu.dynamic_rotate %292 by %c241_i32_183 dim 1 : vector<4x256xf32>, i32 -> vector<4x256xf32>
    %c6_184 = arith.constant 6 : index
    %c0_185 = arith.constant 0 : index
    %485 = vector.load %arg6[%c6_184, %c0_185] : memref<9x256xf32, #tpu.memory_space<vmem>>, vector<1x256xf32>
    %486 = vector.broadcast %485 : vector<1x256xf32> to vector<4x256xf32>
    %487 = arith.mulf %484, %486 : vector<4x256xf32>
    %488 = vector.extract_strided_slice %487 {offsets = [0, 0], sizes = [1, 256], strides = [1, 1]} : vector<4x256xf32> to vector<1x256xf32>
    %c24_186 = arith.constant 24 : index
    %c0_187 = arith.constant 0 : index
    %c0_188 = arith.constant 0 : index
    %489 = vector.load %arg4[%c24_186, %c0_187, %c0_188] : memref<36x4x1xf32, #tpu.memory_space<vmem>>, vector<1x4x1xf32>
    %490 = vector.shape_cast %489 : vector<1x4x1xf32> to vector<4x1xf32>
    %491 = vector.broadcast %490 : vector<4x1xf32> to vector<4x256xf32>
    %492 = vector.broadcast %488 : vector<1x256xf32> to vector<4x256xf32>
    %493 = arith.mulf %491, %492 : vector<4x256xf32>
    %494 = arith.addf %483, %493 : vector<4x256xf32>
    %495 = vector.extract_strided_slice %487 {offsets = [1, 0], sizes = [1, 256], strides = [1, 1]} : vector<4x256xf32> to vector<1x256xf32>
    %c25_189 = arith.constant 25 : index
    %c0_190 = arith.constant 0 : index
    %c0_191 = arith.constant 0 : index
    %496 = vector.load %arg4[%c25_189, %c0_190, %c0_191] : memref<36x4x1xf32, #tpu.memory_space<vmem>>, vector<1x4x1xf32>
    %497 = vector.shape_cast %496 : vector<1x4x1xf32> to vector<4x1xf32>
    %498 = vector.broadcast %497 : vector<4x1xf32> to vector<4x256xf32>
    %499 = vector.broadcast %495 : vector<1x256xf32> to vector<4x256xf32>
    %500 = arith.mulf %498, %499 : vector<4x256xf32>
    %501 = arith.addf %494, %500 : vector<4x256xf32>
    %502 = vector.extract_strided_slice %487 {offsets = [2, 0], sizes = [1, 256], strides = [1, 1]} : vector<4x256xf32> to vector<1x256xf32>
    %c26_192 = arith.constant 26 : index
    %c0_193 = arith.constant 0 : index
    %c0_194 = arith.constant 0 : index
    %503 = vector.load %arg4[%c26_192, %c0_193, %c0_194] : memref<36x4x1xf32, #tpu.memory_space<vmem>>, vector<1x4x1xf32>
    %504 = vector.shape_cast %503 : vector<1x4x1xf32> to vector<4x1xf32>
    %505 = vector.broadcast %504 : vector<4x1xf32> to vector<4x256xf32>
    %506 = vector.broadcast %502 : vector<1x256xf32> to vector<4x256xf32>
    %507 = arith.mulf %505, %506 : vector<4x256xf32>
    %508 = arith.addf %501, %507 : vector<4x256xf32>
    %509 = vector.extract_strided_slice %487 {offsets = [3, 0], sizes = [1, 256], strides = [1, 1]} : vector<4x256xf32> to vector<1x256xf32>
    %c27_195 = arith.constant 27 : index
    %c0_196 = arith.constant 0 : index
    %c0_197 = arith.constant 0 : index
    %510 = vector.load %arg4[%c27_195, %c0_196, %c0_197] : memref<36x4x1xf32, #tpu.memory_space<vmem>>, vector<1x4x1xf32>
    %511 = vector.shape_cast %510 : vector<1x4x1xf32> to vector<4x1xf32>
    %512 = vector.broadcast %511 : vector<4x1xf32> to vector<4x256xf32>
    %513 = vector.broadcast %509 : vector<1x256xf32> to vector<4x256xf32>
    %514 = arith.mulf %512, %513 : vector<4x256xf32>
    %515 = arith.addf %508, %514 : vector<4x256xf32>
    %c240_i32_198 = arith.constant 240 : i32
    %516 = tpu.dynamic_rotate %292 by %c240_i32_198 dim 1 : vector<4x256xf32>, i32 -> vector<4x256xf32>
    %c7_199 = arith.constant 7 : index
    %c0_200 = arith.constant 0 : index
    %517 = vector.load %arg6[%c7_199, %c0_200] : memref<9x256xf32, #tpu.memory_space<vmem>>, vector<1x256xf32>
    %518 = vector.broadcast %517 : vector<1x256xf32> to vector<4x256xf32>
    %519 = arith.mulf %516, %518 : vector<4x256xf32>
    %520 = vector.extract_strided_slice %519 {offsets = [0, 0], sizes = [1, 256], strides = [1, 1]} : vector<4x256xf32> to vector<1x256xf32>
    %c28_201 = arith.constant 28 : index
    %c0_202 = arith.constant 0 : index
    %c0_203 = arith.constant 0 : index
    %521 = vector.load %arg4[%c28_201, %c0_202, %c0_203] : memref<36x4x1xf32, #tpu.memory_space<vmem>>, vector<1x4x1xf32>
    %522 = vector.shape_cast %521 : vector<1x4x1xf32> to vector<4x1xf32>
    %523 = vector.broadcast %522 : vector<4x1xf32> to vector<4x256xf32>
    %524 = vector.broadcast %520 : vector<1x256xf32> to vector<4x256xf32>
    %525 = arith.mulf %523, %524 : vector<4x256xf32>
    %526 = arith.addf %515, %525 : vector<4x256xf32>
    %527 = vector.extract_strided_slice %519 {offsets = [1, 0], sizes = [1, 256], strides = [1, 1]} : vector<4x256xf32> to vector<1x256xf32>
    %c29_204 = arith.constant 29 : index
    %c0_205 = arith.constant 0 : index
    %c0_206 = arith.constant 0 : index
    %528 = vector.load %arg4[%c29_204, %c0_205, %c0_206] : memref<36x4x1xf32, #tpu.memory_space<vmem>>, vector<1x4x1xf32>
    %529 = vector.shape_cast %528 : vector<1x4x1xf32> to vector<4x1xf32>
    %530 = vector.broadcast %529 : vector<4x1xf32> to vector<4x256xf32>
    %531 = vector.broadcast %527 : vector<1x256xf32> to vector<4x256xf32>
    %532 = arith.mulf %530, %531 : vector<4x256xf32>
    %533 = arith.addf %526, %532 : vector<4x256xf32>
    %534 = vector.extract_strided_slice %519 {offsets = [2, 0], sizes = [1, 256], strides = [1, 1]} : vector<4x256xf32> to vector<1x256xf32>
    %c30_207 = arith.constant 30 : index
    %c0_208 = arith.constant 0 : index
    %c0_209 = arith.constant 0 : index
    %535 = vector.load %arg4[%c30_207, %c0_208, %c0_209] : memref<36x4x1xf32, #tpu.memory_space<vmem>>, vector<1x4x1xf32>
    %536 = vector.shape_cast %535 : vector<1x4x1xf32> to vector<4x1xf32>
    %537 = vector.broadcast %536 : vector<4x1xf32> to vector<4x256xf32>
    %538 = vector.broadcast %534 : vector<1x256xf32> to vector<4x256xf32>
    %539 = arith.mulf %537, %538 : vector<4x256xf32>
    %540 = arith.addf %533, %539 : vector<4x256xf32>
    %541 = vector.extract_strided_slice %519 {offsets = [3, 0], sizes = [1, 256], strides = [1, 1]} : vector<4x256xf32> to vector<1x256xf32>
    %c31_210 = arith.constant 31 : index
    %c0_211 = arith.constant 0 : index
    %c0_212 = arith.constant 0 : index
    %542 = vector.load %arg4[%c31_210, %c0_211, %c0_212] : memref<36x4x1xf32, #tpu.memory_space<vmem>>, vector<1x4x1xf32>
    %543 = vector.shape_cast %542 : vector<1x4x1xf32> to vector<4x1xf32>
    %544 = vector.broadcast %543 : vector<4x1xf32> to vector<4x256xf32>
    %545 = vector.broadcast %541 : vector<1x256xf32> to vector<4x256xf32>
    %546 = arith.mulf %544, %545 : vector<4x256xf32>
    %547 = arith.addf %540, %546 : vector<4x256xf32>
    %c239_i32_213 = arith.constant 239 : i32
    %548 = tpu.dynamic_rotate %292 by %c239_i32_213 dim 1 : vector<4x256xf32>, i32 -> vector<4x256xf32>
    %c8_214 = arith.constant 8 : index
    %c0_215 = arith.constant 0 : index
    %549 = vector.load %arg6[%c8_214, %c0_215] : memref<9x256xf32, #tpu.memory_space<vmem>>, vector<1x256xf32>
    %550 = vector.broadcast %549 : vector<1x256xf32> to vector<4x256xf32>
    %551 = arith.mulf %548, %550 : vector<4x256xf32>
    %552 = vector.extract_strided_slice %551 {offsets = [0, 0], sizes = [1, 256], strides = [1, 1]} : vector<4x256xf32> to vector<1x256xf32>
    %c32_216 = arith.constant 32 : index
    %c0_217 = arith.constant 0 : index
    %c0_218 = arith.constant 0 : index
    %553 = vector.load %arg4[%c32_216, %c0_217, %c0_218] : memref<36x4x1xf32, #tpu.memory_space<vmem>>, vector<1x4x1xf32>
    %554 = vector.shape_cast %553 : vector<1x4x1xf32> to vector<4x1xf32>
    %555 = vector.broadcast %554 : vector<4x1xf32> to vector<4x256xf32>
    %556 = vector.broadcast %552 : vector<1x256xf32> to vector<4x256xf32>
    %557 = arith.mulf %555, %556 : vector<4x256xf32>
    %558 = arith.addf %547, %557 : vector<4x256xf32>
    %559 = vector.extract_strided_slice %551 {offsets = [1, 0], sizes = [1, 256], strides = [1, 1]} : vector<4x256xf32> to vector<1x256xf32>
    %c33_219 = arith.constant 33 : index
    %c0_220 = arith.constant 0 : index
    %c0_221 = arith.constant 0 : index
    %560 = vector.load %arg4[%c33_219, %c0_220, %c0_221] : memref<36x4x1xf32, #tpu.memory_space<vmem>>, vector<1x4x1xf32>
    %561 = vector.shape_cast %560 : vector<1x4x1xf32> to vector<4x1xf32>
    %562 = vector.broadcast %561 : vector<4x1xf32> to vector<4x256xf32>
    %563 = vector.broadcast %559 : vector<1x256xf32> to vector<4x256xf32>
    %564 = arith.mulf %562, %563 : vector<4x256xf32>
    %565 = arith.addf %558, %564 : vector<4x256xf32>
    %566 = vector.extract_strided_slice %551 {offsets = [2, 0], sizes = [1, 256], strides = [1, 1]} : vector<4x256xf32> to vector<1x256xf32>
    %c34_222 = arith.constant 34 : index
    %c0_223 = arith.constant 0 : index
    %c0_224 = arith.constant 0 : index
    %567 = vector.load %arg4[%c34_222, %c0_223, %c0_224] : memref<36x4x1xf32, #tpu.memory_space<vmem>>, vector<1x4x1xf32>
    %568 = vector.shape_cast %567 : vector<1x4x1xf32> to vector<4x1xf32>
    %569 = vector.broadcast %568 : vector<4x1xf32> to vector<4x256xf32>
    %570 = vector.broadcast %566 : vector<1x256xf32> to vector<4x256xf32>
    %571 = arith.mulf %569, %570 : vector<4x256xf32>
    %572 = arith.addf %565, %571 : vector<4x256xf32>
    %573 = vector.extract_strided_slice %551 {offsets = [3, 0], sizes = [1, 256], strides = [1, 1]} : vector<4x256xf32> to vector<1x256xf32>
    %c35_225 = arith.constant 35 : index
    %c0_226 = arith.constant 0 : index
    %c0_227 = arith.constant 0 : index
    %574 = vector.load %arg4[%c35_225, %c0_226, %c0_227] : memref<36x4x1xf32, #tpu.memory_space<vmem>>, vector<1x4x1xf32>
    %575 = vector.shape_cast %574 : vector<1x4x1xf32> to vector<4x1xf32>
    %576 = vector.broadcast %575 : vector<4x1xf32> to vector<4x256xf32>
    %577 = vector.broadcast %573 : vector<1x256xf32> to vector<4x256xf32>
    %578 = arith.mulf %576, %577 : vector<4x256xf32>
    %579 = arith.addf %572, %578 : vector<4x256xf32>
    %580 = arith.addf %579, %1 : vector<4x256xf32>
    %c0_228 = arith.constant 0 : index
    %c0_229 = arith.constant 0 : index
    %c0_230 = arith.constant 0 : index
    %581 = vector.load %arg7[%c0_228, %c0_229, %c0_230] : memref<1x4x256xf32, #tpu.memory_space<vmem>>, vector<1x4x256xf32>
    %582 = vector.shape_cast %581 : vector<1x4x256xf32> to vector<4x256xf32>
    %583 = vector.shape_cast %580 : vector<4x256xf32> to vector<1x4x256xf32>
    tpu.vector_store %arg7[%c0_228, %c0_229, %c0_230], %583 {strides = array<i32>} : memref<1x4x256xf32, #tpu.memory_space<vmem>>, vector<1x4x256xf32>,
    return
  }
  func.func @transform_0(%arg0: i32) -> (i32, i32, i32) {
    %c0_i32 = arith.constant 0 : i32
    %c0_i32_0 = arith.constant 0 : i32
    %c0_i32_1 = arith.constant 0 : i32
    return %arg0, %c0_i32, %c0_i32_0 : i32, i32, i32
  }
  func.func @transform_1(%arg0: i32) -> (i32, i32, i32) {
    %c0_i32 = arith.constant 0 : i32
    %c0_i32_0 = arith.constant 0 : i32
    %c0_i32_1 = arith.constant 0 : i32
    %c0_i32_2 = arith.constant 0 : i32
    return %c0_i32, %c0_i32_0, %c0_i32_1 : i32, i32, i32
  }
  func.func @transform_2(%arg0: i32) -> (i32, i32) {
    %c0_i32 = arith.constant 0 : i32
    %c0_i32_0 = arith.constant 0 : i32
    %c0_i32_1 = arith.constant 0 : i32
    return %c0_i32, %c0_i32_0 : i32, i32
  }
  func.func @transform_3(%arg0: i32) -> (i32, i32, i32) {
    %c0_i32 = arith.constant 0 : i32
    %c0_i32_0 = arith.constant 0 : i32
    %c0_i32_1 = arith.constant 0 : i32
    %c0_i32_2 = arith.constant 0 : i32
    return %c0_i32, %c0_i32_0, %c0_i32_1 : i32, i32, i32
  }
  func.func @transform_4(%arg0: i32) -> (i32, i32) {
    %c0_i32 = arith.constant 0 : i32
    %c0_i32_0 = arith.constant 0 : i32
    %c0_i32_1 = arith.constant 0 : i32
    return %c0_i32, %c0_i32_0 : i32, i32
  }
  func.func @transform_5(%arg0: i32) -> (i32, i32) {
    %c0_i32 = arith.constant 0 : i32
    %c0_i32_0 = arith.constant 0 : i32
    %c0_i32_1 = arith.constant 0 : i32
    return %c0_i32, %c0_i32_0 : i32, i32
  }
  func.func @transform_6(%arg0: i32) -> (i32, i32, i32) {
    %c0_i32 = arith.constant 0 : i32
    %c0_i32_0 = arith.constant 0 : i32
    %c0_i32_1 = arith.constant 0 : i32
    return %arg0, %c0_i32, %c0_i32_0 : i32, i32, i32
  }
}

</mosaic_0001>

<llo_original>
// kernel: tpu_custom_call.1
$region0: #{tpu_custom_call.1}
  #allocation0 [shape = 'u32[]', space=smem, size = 0x4, offset = 0x4, fixed_abs, tag = 'smem constant byte address 0x4 - core index']
  #allocation1 [shape = 'u32[144,128]{1,0:T(1,128)}', space=vmem, size = 0x12000, scoped, tag = 'internal scratch']
  %s0 = inlined_call_operand.vmem [shape: f32[2,4,256], index: 0, kind: input, shape index: {}]
  %s1 = inlined_call_operand.vmem [shape: f32[36,4,1], index: 1, kind: input, shape index: {}]
  %s2 = inlined_call_operand.vmem [shape: f32[4,1], index: 2, kind: input, shape index: {}]
  %s3 = inlined_call_operand.vmem [shape: f32[36,4,1], index: 3, kind: input, shape index: {}]
  %s4 = inlined_call_operand.vmem [shape: f32[4,1], index: 4, kind: input, shape index: {}]
  %s5 = inlined_call_operand.vmem [shape: f32[9,256], index: 5, kind: input, shape index: {}]
  %s6 = inlined_call_operand.hbm [shape: f32[2,4,256], index: 6, kind: output, shape index: {}]
  %s7 = sld [smem:[#allocation0]]
  $region57: #{tpu_custom_call.1} parent=0
    _
  %s9 = ssub.s32 1, %s7
  %s10 = scalar_select 0, %s9, %s7
  $region1: #{tpu_custom_call.1} parent=0
    #allocation2 [shape = 'u8[8192]{0}', space=vmem, size = 0x2000, scoped, tag = 'output window, operand 0']
    #allocation3 [shape = 's32[2]{0}', space=sflag, size = 0x8, scoped, tag = 'scoped memory for tpu_custom_call.1']
    %11 = vsyncpa [#allocation3], 0
    %s12 = scalar_lea.sflag [#allocation3], 1
    %13 = vsyncpa %s12, 0
    loop: start=0, step=1, limit=4
    $region2: #{tpu_custom_call.1} parent=1 // loop_pre_header
      _
    $region3: #{tpu_custom_call.1} parent=1 // loop_header
      %s15 = sphi 0, %s19
      %p16 = scmp.ge.s32.totalorder %s15, 4
      %s25 = sphi 0, %s27
      %s28 = sphi 0, %s25
      %s29 = sphi 0, %s28
      %s45 = sphi 0, %s29
      %s49 = sphi 0, %s49
      %s51 = sphi 0, %s49
      %s52 = sphi 0, %s51
      %s66 = sphi 0, %s52
      %s70 = sphi 0, %s70
      %s72 = sphi 0, %s70
      %s73 = sphi 0, %s72
      %s87 = sphi 0, %s73
      %s91 = sphi 0, %s91
      %s93 = sphi 0, %s91
      %s94 = sphi 0, %s93
      %s108 = sphi 0, %s94
      %s112 = sphi 0, %s112
      %s114 = sphi 0, %s112
      %s115 = sphi 0, %s114
      %s129 = sphi 0, %s115
      %s133 = sphi 0, %s133
      %s135 = sphi 0, %s133
      %s136 = sphi 0, %s135
      %s150 = sphi 0, %s136
      %s156 = sphi 0, %s158
      %s159 = sphi 0, %s156
      %s160 = sphi 0, %s159
      %s176 = sphi 0, %s160
    $region4: #{tpu_custom_call.1} parent=1 // loop_header_branch
      %18 = sbr.rel (%p16) target = $region8
    $region5: #{tpu_custom_call.1} parent=1 // loop_body
      %s20 = ssub.s32 %s15, 1
      %s21 = ssub.s32 %s15, 2
      %s22 = sadd.s32 %s15, 1
      %s23 = ssub.s32 %s15, %s22
      %p24 = scmp.eq.s32.totalorder %s23, 0
      %s26 = sadd.s32 %s25, 1
      %s27 = scalar_select %p24, %s25, %s26
      %p30 = pneg %p24
      %p31 = scmp.eq.s32.totalorder %s15, 1
      %p32 = por %p30, %p31
      %p33 = scmp.ne.s32.totalorder %s25, %s28
      %p34 = scmp.eq.s32.totalorder %s15, 0
      %p35 = por %p33, %p34
      %p36 = scmp.ne.s32.totalorder %s25, %s28
      %p37 = scmp.eq.s32.totalorder %s20, 1
      %p38 = por %p36, %p37
      %p39 = scmp.ne.s32.totalorder %s28, %s29
      %p40 = scmp.eq.s32.totalorder %s20, 0
      %p41 = por %p39, %p40
      %p42 = scmp.ne.s32.totalorder %s28, %s29
      %p43 = scmp.eq.s32.totalorder %s21, 1
      %p44 = por %p42, %p43
      %p46 = scmp.ne.s32.totalorder %s29, %s45
      %p47 = scmp.eq.s32.totalorder %s21, 0
      %p48 = por %p46, %p47
      %s50 = sadd.s32 %s49, 1
      %p53 = scmp.eq.s32.totalorder %s15, 1
      %p54 = scmp.ne.s32.totalorder %s49, %s51
      %p55 = scmp.eq.s32.totalorder %s15, 0
      %p56 = por %p54, %p55
      %p57 = scmp.ne.s32.totalorder %s49, %s51
      %p58 = scmp.eq.s32.totalorder %s20, 1
      %p59 = por %p57, %p58
      %p60 = scmp.ne.s32.totalorder %s51, %s52
      %p61 = scmp.eq.s32.totalorder %s20, 0
      %p62 = por %p60, %p61
      %p63 = scmp.ne.s32.totalorder %s51, %s52
      %p64 = scmp.eq.s32.totalorder %s21, 1
      %p65 = por %p63, %p64
      %p67 = scmp.ne.s32.totalorder %s52, %s66
      %p68 = scmp.eq.s32.totalorder %s21, 0
      %p69 = por %p67, %p68
      %s71 = sadd.s32 %s70, 1
      %p74 = scmp.eq.s32.totalorder %s15, 1
      %p75 = scmp.ne.s32.totalorder %s70, %s72
      %p76 = scmp.eq.s32.totalorder %s15, 0
      %p77 = por %p75, %p76
      %p78 = scmp.ne.s32.totalorder %s70, %s72
      %p79 = scmp.eq.s32.totalorder %s20, 1
      %p80 = por %p78, %p79
      %p81 = scmp.ne.s32.totalorder %s72, %s73
      %p82 = scmp.eq.s32.totalorder %s20, 0
      %p83 = por %p81, %p82
      %p84 = scmp.ne.s32.totalorder %s72, %s73
      %p85 = scmp.eq.s32.totalorder %s21, 1
      %p86 = por %p84, %p85
      %p88 = scmp.ne.s32.totalorder %s73, %s87
      %p89 = scmp.eq.s32.totalorder %s21, 0
      %p90 = por %p88, %p89
      %s92 = sadd.s32 %s91, 1
      %p95 = scmp.eq.s32.totalorder %s15, 1
      %p96 = scmp.ne.s32.totalorder %s91, %s93
      %p97 = scmp.eq.s32.totalorder %s15, 0
      %p98 = por %p96, %p97
      %p99 = scmp.ne.s32.totalorder %s91, %s93
      %p100 = scmp.eq.s32.totalorder %s20, 1
      %p101 = por %p99, %p100
      %p102 = scmp.ne.s32.totalorder %s93, %s94
      %p103 = scmp.eq.s32.totalorder %s20, 0
      %p104 = por %p102, %p103
      %p105 = scmp.ne.s32.totalorder %s93, %s94
      %p106 = scmp.eq.s32.totalorder %s21, 1
      %p107 = por %p105, %p106
      %p109 = scmp.ne.s32.totalorder %s94, %s108
      %p110 = scmp.eq.s32.totalorder %s21, 0
      %p111 = por %p109, %p110
      %s113 = sadd.s32 %s112, 1
      %p116 = scmp.eq.s32.totalorder %s15, 1
      %p117 = scmp.ne.s32.totalorder %s112, %s114
      %p118 = scmp.eq.s32.totalorder %s15, 0
      %p119 = por %p117, %p118
      %p120 = scmp.ne.s32.totalorder %s112, %s114
      %p121 = scmp.eq.s32.totalorder %s20, 1
      %p122 = por %p120, %p121
      %p123 = scmp.ne.s32.totalorder %s114, %s115
      %p124 = scmp.eq.s32.totalorder %s20, 0
      %p125 = por %p123, %p124
      %p126 = scmp.ne.s32.totalorder %s114, %s115
      %p127 = scmp.eq.s32.totalorder %s21, 1
      %p128 = por %p126, %p127
      %p130 = scmp.ne.s32.totalorder %s115, %s129
      %p131 = scmp.eq.s32.totalorder %s21, 0
      %p132 = por %p130, %p131
      %s134 = sadd.s32 %s133, 1
      %p137 = scmp.eq.s32.totalorder %s15, 1
      %p138 = scmp.ne.s32.totalorder %s133, %s135
      %p139 = scmp.eq.s32.totalorder %s15, 0
      %p140 = por %p138, %p139
      %p141 = scmp.ne.s32.totalorder %s133, %s135
      %p142 = scmp.eq.s32.totalorder %s20, 1
      %p143 = por %p141, %p142
      %p144 = scmp.ne.s32.totalorder %s135, %s136
      %p145 = scmp.eq.s32.totalorder %s20, 0
      %p146 = por %p144, %p145
      %p147 = scmp.ne.s32.totalorder %s135, %s136
      %p148 = scmp.eq.s32.totalorder %s21, 1
      %p149 = por %p147, %p148
      %p151 = scmp.ne.s32.totalorder %s136, %s150
      %p152 = scmp.eq.s32.totalorder %s21, 0
      %p153 = por %p151, %p152
      %s154 = ssub.s32 %s15, %s22
      %p155 = scmp.eq.s32.totalorder %s154, 0
      %s157 = sadd.s32 %s156, 1
      %s158 = scalar_select %p155, %s156, %s157
      %p161 = pneg %p155
      %p162 = scmp.eq.s32.totalorder %s15, 1
      %p163 = por %p161, %p162
      %p164 = scmp.ne.s32.totalorder %s156, %s159
      %p165 = scmp.eq.s32.totalorder %s15, 0
      %p166 = por %p164, %p165
      %p167 = scmp.ne.s32.totalorder %s156, %s159
      %p168 = scmp.eq.s32.totalorder %s20, 1
      %p169 = por %p167, %p168
      %p170 = scmp.ne.s32.totalorder %s159, %s160
      %p171 = scmp.eq.s32.totalorder %s20, 0
      %p172 = por %p170, %p171
      %p173 = scmp.ne.s32.totalorder %s159, %s160
      %p174 = scmp.eq.s32.totalorder %s21, 1
      %p175 = por %p173, %p174
      %p177 = scmp.ne.s32.totalorder %s160, %s176
      %p178 = scmp.eq.s32.totalorder %s21, 0
      %p179 = por %p177, %p178
      %p180 = scmp.le.s32.totalorder 1, %s15
      %p181 = scmp.lt.s32.totalorder %s15, 3
      %p182 = pnand %p180, %p181
      %p183 = pneg %p182
      // Predicated region
      $region9: #{tpu_custom_call.1} parent=5 // pred_check
        _
      $region10: #{tpu_custom_call.1} parent=5 // pred_check_branch
        %185 = sbr.rel (%p182) target = $region12
      $region11: #{tpu_custom_call.1} parent=5 // pred_region
        %s186 = ssub.s32 %s15, 1
        // Predicated region
        $region13: #{tpu_custom_call.1} parent=11 // pred_check
          %p187 = pneg %p62
        $region14: #{tpu_custom_call.1} parent=11 // pred_check_branch
          %189 = sbr.rel (%p187) target = $region16
        $region15: #{tpu_custom_call.1} parent=11 // pred_region
          _
        $region16: #{tpu_custom_call.1} parent=11 // pred_fallthru
          _
        // Predicated region
        $region17: #{tpu_custom_call.1} parent=11 // pred_check
          %p190 = pneg %p83
        $region18: #{tpu_custom_call.1} parent=11 // pred_check_branch
          %192 = sbr.rel (%p190) target = $region20
        $region19: #{tpu_custom_call.1} parent=11 // pred_region
          _
        $region20: #{tpu_custom_call.1} parent=11 // pred_fallthru
          _
        // Predicated region
        $region21: #{tpu_custom_call.1} parent=11 // pred_check
          %p193 = pneg %p104
        $region22: #{tpu_custom_call.1} parent=11 // pred_check_branch
          %195 = sbr.rel (%p193) target = $region24
        $region23: #{tpu_custom_call.1} parent=11 // pred_region
          _
        $region24: #{tpu_custom_call.1} parent=11 // pred_fallthru
          _
        // Predicated region
        $region25: #{tpu_custom_call.1} parent=11 // pred_check
          %p196 = pneg %p125
        $region26: #{tpu_custom_call.1} parent=11 // pred_check_branch
          %198 = sbr.rel (%p196) target = $region28
        $region27: #{tpu_custom_call.1} parent=11 // pred_region
          _
        $region28: #{tpu_custom_call.1} parent=11 // pred_fallthru
          _
        // Predicated region
        $region29: #{tpu_custom_call.1} parent=11 // pred_check
          %p199 = pneg %p146
        $region30: #{tpu_custom_call.1} parent=11 // pred_check_branch
          %201 = sbr.rel (%p199) target = $region32
        $region31: #{tpu_custom_call.1} parent=11 // pred_region
          _
        $region32: #{tpu_custom_call.1} parent=11 // pred_fallthru
          _
      $region12: #{tpu_custom_call.1} parent=5 // pred_fallthru
        _
      %p202 = scmp.lt.s32.totalorder %s15, 2
      // Predicated region
      $region33: #{tpu_custom_call.1} parent=5 // pred_check
        %p203 = pneg %p202
      $region34: #{tpu_custom_call.1} parent=5 // pred_check_branch
        %205 = sbr.rel (%p203) target = $region36
      $region35: #{tpu_custom_call.1} parent=5 // pred_region
        // Predicated region
        $region37: #{tpu_custom_call.1} parent=35 // pred_check
          %p206 = pneg %p35
        $region38: #{tpu_custom_call.1} parent=35 // pred_check_branch
          %208 = sbr.rel (%p206) target = $region40
        $region39: #{tpu_custom_call.1} parent=35 // pred_region
          %p209 = scmp.lt.s32.totalorder %s15, 1
          %s210 = scalar_select %p209, %s15, 1
          %s211 = smul.addr %s210, 2
          %s212 = smul.addr %s211, 4
          %s213 = scalar_lea.vmem %s0, %s212
        $region40: #{tpu_custom_call.1} parent=35 // pred_fallthru
          _
      $region36: #{tpu_custom_call.1} parent=5 // pred_fallthru
        _
      %p214 = scmp.le.s32.totalorder 1, %s15
      %p215 = scmp.lt.s32.totalorder %s15, 3
      %p216 = pnand %p214, %p215
      %p217 = pneg %p216
      // Predicated region
      $region41: #{tpu_custom_call.1} parent=5 // pred_check
        _
      $region42: #{tpu_custom_call.1} parent=5 // pred_check_branch
        %219 = sbr.rel (%p216) target = $region44
      $region43: #{tpu_custom_call.1} parent=5 // pred_region
        %s220 = ssub.s32 %s15, 1
        %p221 = scmp.lt.s32.totalorder %s20, 1
        %s222 = scalar_select %p221, %s20, 1
        %s223 = smul.addr %s222, 2
        %s224 = smul.addr %s223, 4
        %s225 = scalar_lea.vmem %s0, %s224
        %p226 = pneg %p41
        %p227 = pneg %p38
        %p228 = pneg %p62
        %p229 = pneg %p59
        %p230 = pneg %p83
        %p231 = pneg %p80
        %p232 = pneg %p104
        %p233 = pneg %p101
        %p234 = pneg %p125
        %p235 = pneg %p122
        %p236 = pneg %p146
        %p237 = pneg %p143
        %p238 = pneg %p172
        %p239 = pneg %p169
        %s240 = sand.u32 %s159, 1
        %s241 = scalar_lea.sflag [#allocation3], %s240
        %s242 = sand.u32 %s159, 1
        %s243 = smul.addr %s242, 8
        %s244 = scalar_lea.vmem [#allocation2], %s243
        %p245 = scmp.lt.s32.totalorder %s20, 1
        %s246 = scalar_select %p245, %s20, 1
        %s247 = smul.addr %s246, 2
        %s248 = smul.addr %s247, 4
        %s249 = scalar_lea.vmem %s0, %s248
        %v250 = vld [vmem:[%s249] sm:$0xff]
        %v251 = vmax.f32 %v250, 0.0
        %v252 = vld [vmem:[%s2] sm:$0xf]
        %254 = vset.pattern.permute.xlu0 0
        %255 = vperm.xlu0 %254, %v252
        %v256 = vpop.permute.xlu0 %255
        %v259 = vcombine.high %v251, %v251
        %261 = vrot.lane.b32.xlu0 %v251, 17
        %v262 = vpop.permute.xlu0 %261
        %263 = vrot.lane.b32.xlu0 %v259, 17
        %v264 = vpop.permute.xlu0 %263
        %v265 = vlaneseq
        %v266 = vand.u32 %v265, 127
        %vm267 = vcmp.lt.s32.totalorder %v266, 17
        %v268 = vsel %vm267, %v262, %v264
        %v269 = vsel %vm267, %v264, %v262
        %v270 = vld [vmem:[%s5] ss:$8 sm:$0x3]
        %v272 = vlaneseq
        %v273 = vshrl.u32 %v272, 7
        %v274 = vsub.s32 0, %v273
        %v275 = vrot.slane %v270, %v274
        %v276 = vlaneseq
        %v277 = vshrl.u32 %v276, 7
        %v278 = vsub.s32 1, %v277
        %v279 = vrot.slane %v270, %v278
        %v282 = vmul.f32 %v269, %v275
        %v283 = vmul.f32 %v268, %v279
        %v284 = vld [vmem:[%s1] sm:$0xf]
        %286 = vset.pattern.permute.xlu0 0
        %287 = vperm.xlu0 %286, %v284
        %v288 = vpop.permute.xlu0 %287
        %v290 = vlaneseq
        %v291 = vshrl.u32 %v290, 7
        %v292 = vsub.s32 0, %v291
        %v293 = vrot.slane %v282, %v292
        %v294 = vlaneseq
        %v295 = vshrl.u32 %v294, 7
        %v296 = vsub.s32 0, %v295
        %v297 = vrot.slane %v283, %v296
        %v298 = vmul.f32 %v288, %v293
        %v299 = vmul.f32 %v288, %v297
        %v300 = vadd.f32 %v256, %v298
        %v301 = vadd.f32 %v256, %v299
        %s302 = scalar_lea.vmem %s1, 4
        %v303 = vld [vmem:[%s302] sm:$0xf]
        %305 = vset.pattern.permute.xlu0 0
        %306 = vperm.xlu0 %305, %v303
        %v307 = vpop.permute.xlu0 %306
        %v309 = vlaneseq
        %v310 = vshrl.u32 %v309, 7
        %v311 = vsub.s32 1, %v310
        %v312 = vrot.slane %v282, %v311
        %v313 = vlaneseq
        %v314 = vshrl.u32 %v313, 7
        %v315 = vsub.s32 1, %v314
        %v316 = vrot.slane %v283, %v315
        %v317 = vmul.f32 %v307, %v312
        %v318 = vmul.f32 %v307, %v316
        %v319 = vadd.f32 %v300, %v317
        %v320 = vadd.f32 %v301, %v318
        %s321 = scalar_lea.vmem %s1, 8
        %v322 = vld [vmem:[%s321] sm:$0xf]
        %324 = vset.pattern.permute.xlu0 0
        %325 = vperm.xlu0 %324, %v322
        %v326 = vpop.permute.xlu0 %325
        %v328 = vlaneseq
        %v329 = vshrl.u32 %v328, 7
        %v330 = vsub.s32 2, %v329
        %v331 = vrot.slane %v282, %v330
        %v332 = vlaneseq
        %v333 = vshrl.u32 %v332, 7
        %v334 = vsub.s32 2, %v333
        %v335 = vrot.slane %v283, %v334
        %v336 = vmul.f32 %v326, %v331
        %v337 = vmul.f32 %v326, %v335
        %v338 = vadd.f32 %v319, %v336
        %v339 = vadd.f32 %v320, %v337
        %s340 = scalar_lea.vmem %s1, 12
        %v341 = vld [vmem:[%s340] sm:$0xf]
        %343 = vset.pattern.permute.xlu0 0
        %344 = vperm.xlu0 %343, %v341
        %v345 = vpop.permute.xlu0 %344
        %v347 = vlaneseq
        %v348 = vshrl.u32 %v347, 7
        %v349 = vsub.s32 3, %v348
        %v350 = vrot.slane %v282, %v349
        %v351 = vlaneseq
        %v352 = vshrl.u32 %v351, 7
        %v353 = vsub.s32 3, %v352
        %v354 = vrot.slane %v283, %v353
        %v355 = vmul.f32 %v345, %v350
        %v356 = vmul.f32 %v345, %v354
        %v357 = vadd.f32 %v338, %v355
        %v358 = vadd.f32 %v339, %v356
        %359 = vrot.lane.b32.xlu0 %v251, 16
        %v360 = vpop.permute.xlu0 %359
        %361 = vrot.lane.b32.xlu0 %v259, 16
        %v362 = vpop.permute.xlu0 %361
        %vm363 = vcmp.lt.s32.totalorder %v266, 16
        %v364 = vsel %vm363, %v360, %v362
        %v365 = vsel %vm363, %v362, %v360
        %s366 = scalar_lea.vmem %s5, 1
        %v367 = vld [vmem:[%s366] ss:$8 sm:$0x3]
        %v369 = vlaneseq
        %v370 = vshrl.u32 %v369, 7
        %v371 = vsub.s32 0, %v370
        %v372 = vrot.slane %v367, %v371
        %v373 = vlaneseq
        %v374 = vshrl.u32 %v373, 7
        %v375 = vsub.s32 1, %v374
        %v376 = vrot.slane %v367, %v375
        %v379 = vmul.f32 %v365, %v372
        %v380 = vmul.f32 %v364, %v376
        %s381 = scalar_lea.vmem %s1, 16
        %v382 = vld [vmem:[%s381] sm:$0xf]
        %384 = vset.pattern.permute.xlu0 0
        %385 = vperm.xlu0 %384, %v382
        %v386 = vpop.permute.xlu0 %385
        %v388 = vlaneseq
        %v389 = vshrl.u32 %v388, 7
        %v390 = vsub.s32 0, %v389
        %v391 = vrot.slane %v379, %v390
        %v392 = vlaneseq
        %v393 = vshrl.u32 %v392, 7
        %v394 = vsub.s32 0, %v393
        %v395 = vrot.slane %v380, %v394
        %v396 = vmul.f32 %v386, %v391
        %v397 = vmul.f32 %v386, %v395
        %v398 = vadd.f32 %v357, %v396
        %v399 = vadd.f32 %v358, %v397
        %s400 = scalar_lea.vmem %s1, 20
        %v401 = vld [vmem:[%s400] sm:$0xf]
        %403 = vset.pattern.permute.xlu0 0
        %404 = vperm.xlu0 %403, %v401
        %v405 = vpop.permute.xlu0 %404
        %v407 = vlaneseq
        %v408 = vshrl.u32 %v407, 7
        %v409 = vsub.s32 1, %v408
        %v410 = vrot.slane %v379, %v409
        %v411 = vlaneseq
        %v412 = vshrl.u32 %v411, 7
        %v413 = vsub.s32 1, %v412
        %v414 = vrot.slane %v380, %v413
        %v415 = vmul.f32 %v405, %v410
        %v416 = vmul.f32 %v405, %v414
        %v417 = vadd.f32 %v398, %v415
        %v418 = vadd.f32 %v399, %v416
        %s419 = scalar_lea.vmem %s1, 24
        %v420 = vld [vmem:[%s419] sm:$0xf]
        %422 = vset.pattern.permute.xlu0 0
        %423 = vperm.xlu0 %422, %v420
        %v424 = vpop.permute.xlu0 %423
        %v426 = vlaneseq
        %v427 = vshrl.u32 %v426, 7
        %v428 = vsub.s32 2, %v427
        %v429 = vrot.slane %v379, %v428
        %v430 = vlaneseq
        %v431 = vshrl.u32 %v430, 7
        %v432 = vsub.s32 2, %v431
        %v433 = vrot.slane %v380, %v432
        %v434 = vmul.f32 %v424, %v429
        %v435 = vmul.f32 %v424, %v433
        %v436 = vadd.f32 %v417, %v434
        %v437 = vadd.f32 %v418, %v435
        %s438 = scalar_lea.vmem %s1, 28
        %v439 = vld [vmem:[%s438] sm:$0xf]
        %441 = vset.pattern.permute.xlu0 0
        %442 = vperm.xlu0 %441, %v439
        %v443 = vpop.permute.xlu0 %442
        %v445 = vlaneseq
        %v446 = vshrl.u32 %v445, 7
        %v447 = vsub.s32 3, %v446
        %v448 = vrot.slane %v379, %v447
        %v449 = vlaneseq
        %v450 = vshrl.u32 %v449, 7
        %v451 = vsub.s32 3, %v450
        %v452 = vrot.slane %v380, %v451
        %v453 = vmul.f32 %v443, %v448
        %v454 = vmul.f32 %v443, %v452
        %v455 = vadd.f32 %v436, %v453
        %v456 = vadd.f32 %v437, %v454
        %457 = vrot.lane.b32.xlu0 %v251, 15
        %v458 = vpop.permute.xlu0 %457
        %459 = vrot.lane.b32.xlu0 %v259, 15
        %v460 = vpop.permute.xlu0 %459
        %vm461 = vcmp.lt.s32.totalorder %v266, 15
        %v462 = vsel %vm461, %v458, %v460
        %v463 = vsel %vm461, %v460, %v458
        %s464 = scalar_lea.vmem %s5, 2
        %v465 = vld [vmem:[%s464] ss:$8 sm:$0x3]
        %v467 = vlaneseq
        %v468 = vshrl.u32 %v467, 7
        %v469 = vsub.s32 0, %v468
        %v470 = vrot.slane %v465, %v469
        %v471 = vlaneseq
        %v472 = vshrl.u32 %v471, 7
        %v473 = vsub.s32 1, %v472
        %v474 = vrot.slane %v465, %v473
        %v477 = vmul.f32 %v463, %v470
        %v478 = vmul.f32 %v462, %v474
        %s479 = scalar_lea.vmem %s1, 32
        %v480 = vld [vmem:[%s479] sm:$0xf]
        %482 = vset.pattern.permute.xlu0 0
        %483 = vperm.xlu0 %482, %v480
        %v484 = vpop.permute.xlu0 %483
        %v486 = vlaneseq
        %v487 = vshrl.u32 %v486, 7
        %v488 = vsub.s32 0, %v487
        %v489 = vrot.slane %v477, %v488
        %v490 = vlaneseq
        %v491 = vshrl.u32 %v490, 7
        %v492 = vsub.s32 0, %v491
        %v493 = vrot.slane %v478, %v492
        %v494 = vmul.f32 %v484, %v489
        %v495 = vmul.f32 %v484, %v493
        %v496 = vadd.f32 %v455, %v494
        %v497 = vadd.f32 %v456, %v495
        %s498 = scalar_lea.vmem %s1, 36
        %v499 = vld [vmem:[%s498] sm:$0xf]
        %501 = vset.pattern.permute.xlu0 0
        %502 = vperm.xlu0 %501, %v499
        %v503 = vpop.permute.xlu0 %502
        %v505 = vlaneseq
        %v506 = vshrl.u32 %v505, 7
        %v507 = vsub.s32 1, %v506
        %v508 = vrot.slane %v477, %v507
        %v509 = vlaneseq
        %v510 = vshrl.u32 %v509, 7
        %v511 = vsub.s32 1, %v510
        %v512 = vrot.slane %v478, %v511
        %v513 = vmul.f32 %v503, %v508
        %v514 = vmul.f32 %v503, %v512
        %v515 = vadd.f32 %v496, %v513
        %v516 = vadd.f32 %v497, %v514
        %s517 = scalar_lea.vmem %s1, 40
        %v518 = vld [vmem:[%s517] sm:$0xf]
        %520 = vset.pattern.permute.xlu0 0
        %521 = vperm.xlu0 %520, %v518
        %v522 = vpop.permute.xlu0 %521
        %v524 = vlaneseq
        %v525 = vshrl.u32 %v524, 7
        %v526 = vsub.s32 2, %v525
        %v527 = vrot.slane %v477, %v526
        %v528 = vlaneseq
        %v529 = vshrl.u32 %v528, 7
        %v530 = vsub.s32 2, %v529
        %v531 = vrot.slane %v478, %v530
        %v532 = vmul.f32 %v522, %v527
        %v533 = vmul.f32 %v522, %v531
        %v534 = vadd.f32 %v515, %v532
        %v535 = vadd.f32 %v516, %v533
        %s536 = scalar_lea.vmem %s1, 44
        %v537 = vld [vmem:[%s536] sm:$0xf]
        %539 = vset.pattern.permute.xlu0 0
        %540 = vperm.xlu0 %539, %v537
        %v541 = vpop.permute.xlu0 %540
        %v543 = vlaneseq
        %v544 = vshrl.u32 %v543, 7
        %v545 = vsub.s32 3, %v544
        %v546 = vrot.slane %v477, %v545
        %v547 = vlaneseq
        %v548 = vshrl.u32 %v547, 7
        %v549 = vsub.s32 3, %v548
        %v550 = vrot.slane %v478, %v549
        %v551 = vmul.f32 %v541, %v546
        %v552 = vmul.f32 %v541, %v550
        %v553 = vadd.f32 %v534, %v551
        %v554 = vadd.f32 %v535, %v552
        %555 = vrot.lane.b32.xlu0 %v251, 1
        %v556 = vpop.permute.xlu0 %555
        %557 = vrot.lane.b32.xlu0 %v259, 1
        %v558 = vpop.permute.xlu0 %557
        %vm559 = vcmp.lt.s32.totalorder %v266, 1
        %v560 = vsel %vm559, %v556, %v558
        %v561 = vsel %vm559, %v558, %v556
        %s562 = scalar_lea.vmem %s5, 3
        %v563 = vld [vmem:[%s562] ss:$8 sm:$0x3]
        %v565 = vlaneseq
        %v566 = vshrl.u32 %v565, 7
        %v567 = vsub.s32 0, %v566
        %v568 = vrot.slane %v563, %v567
        %v569 = vlaneseq
        %v570 = vshrl.u32 %v569, 7
        %v571 = vsub.s32 1, %v570
        %v572 = vrot.slane %v563, %v571
        %v575 = vmul.f32 %v561, %v568
        %v576 = vmul.f32 %v560, %v572
        %s577 = scalar_lea.vmem %s1, 48
        %v578 = vld [vmem:[%s577] sm:$0xf]
        %580 = vset.pattern.permute.xlu0 0
        %581 = vperm.xlu0 %580, %v578
        %v582 = vpop.permute.xlu0 %581
        %v584 = vlaneseq
        %v585 = vshrl.u32 %v584, 7
        %v586 = vsub.s32 0, %v585
        %v587 = vrot.slane %v575, %v586
        %v588 = vlaneseq
        %v589 = vshrl.u32 %v588, 7
        %v590 = vsub.s32 0, %v589
        %v591 = vrot.slane %v576, %v590
        %v592 = vmul.f32 %v582, %v587
        %v593 = vmul.f32 %v582, %v591
        %v594 = vadd.f32 %v553, %v592
        %v595 = vadd.f32 %v554, %v593
        %s596 = scalar_lea.vmem %s1, 52
        %v597 = vld [vmem:[%s596] sm:$0xf]
        %599 = vset.pattern.permute.xlu0 0
        %600 = vperm.xlu0 %599, %v597
        %v601 = vpop.permute.xlu0 %600
        %v603 = vlaneseq
        %v604 = vshrl.u32 %v603, 7
        %v605 = vsub.s32 1, %v604
        %v606 = vrot.slane %v575, %v605
        %v607 = vlaneseq
        %v608 = vshrl.u32 %v607, 7
        %v609 = vsub.s32 1, %v608
        %v610 = vrot.slane %v576, %v609
        %v611 = vmul.f32 %v601, %v606
        %v612 = vmul.f32 %v601, %v610
        %v613 = vadd.f32 %v594, %v611
        %v614 = vadd.f32 %v595, %v612
        %s615 = scalar_lea.vmem %s1, 56
        %v616 = vld [vmem:[%s615] sm:$0xf]
        %618 = vset.pattern.permute.xlu0 0
        %619 = vperm.xlu0 %618, %v616
        %v620 = vpop.permute.xlu0 %619
        %v622 = vlaneseq
        %v623 = vshrl.u32 %v622, 7
        %v624 = vsub.s32 2, %v623
        %v625 = vrot.slane %v575, %v624
        %v626 = vlaneseq
        %v627 = vshrl.u32 %v626, 7
        %v628 = vsub.s32 2, %v627
        %v629 = vrot.slane %v576, %v628
        %v630 = vmul.f32 %v620, %v625
        %v631 = vmul.f32 %v620, %v629
        %v632 = vadd.f32 %v613, %v630
        %v633 = vadd.f32 %v614, %v631
        %s634 = scalar_lea.vmem %s1, 60
        %v635 = vld [vmem:[%s634] sm:$0xf]
        %637 = vset.pattern.permute.xlu0 0
        %638 = vperm.xlu0 %637, %v635
        %v639 = vpop.permute.xlu0 %638
        %v641 = vlaneseq
        %v642 = vshrl.u32 %v641, 7
        %v643 = vsub.s32 3, %v642
        %v644 = vrot.slane %v575, %v643
        %v645 = vlaneseq
        %v646 = vshrl.u32 %v645, 7
        %v647 = vsub.s32 3, %v646
        %v648 = vrot.slane %v576, %v647
        %v649 = vmul.f32 %v639, %v644
        %v650 = vmul.f32 %v639, %v648
        %v651 = vadd.f32 %v632, %v649
        %v652 = vadd.f32 %v633, %v650
        %s653 = scalar_lea.vmem %s1, 64
        %v654 = vld [vmem:[%s653] sm:$0xf]
        %656 = vset.pattern.permute.xlu0 0
        %657 = vperm.xlu0 %656, %v654
        %v658 = vpop.permute.xlu0 %657
        %v660 = vlaneseq
        %v661 = vshrl.u32 %v660, 7
        %v662 = vsub.s32 0, %v661
        %v663 = vrot.slane %v251, %v662
        %v664 = vlaneseq
        %v665 = vshrl.u32 %v664, 7
        %v666 = vsub.s32 4, %v665
        %v667 = vrot.slane %v251, %v666
        %v670 = vlaneseq
        %v671 = vshrl.u32 %v670, 7
        %v672 = vsub.s32 0, %v671
        %v673 = vrot.slane %v663, %v672
        %v674 = vlaneseq
        %v675 = vshrl.u32 %v674, 7
        %v676 = vsub.s32 0, %v675
        %v677 = vrot.slane %v667, %v676
        %v678 = vmul.f32 %v658, %v673
        %v679 = vmul.f32 %v658, %v677
        %v680 = vadd.f32 %v651, %v678
        %v681 = vadd.f32 %v652, %v679
        %s682 = scalar_lea.vmem %s1, 68
        %v683 = vld [vmem:[%s682] sm:$0xf]
        %685 = vset.pattern.permute.xlu0 0
        %686 = vperm.xlu0 %685, %v683
        %v687 = vpop.permute.xlu0 %686
        %v689 = vlaneseq
        %v690 = vshrl.u32 %v689, 7
        %v691 = vsub.s32 1, %v690
        %v692 = vrot.slane %v251, %v691
        %v693 = vlaneseq
        %v694 = vshrl.u32 %v693, 7
        %v695 = vsub.s32 5, %v694
        %v696 = vrot.slane %v251, %v695
        %v699 = vlaneseq
        %v700 = vshrl.u32 %v699, 7
        %v701 = vsub.s32 1, %v700
        %v702 = vrot.slane %v692, %v701
        %v703 = vlaneseq
        %v704 = vshrl.u32 %v703, 7
        %v705 = vsub.s32 1, %v704
        %v706 = vrot.slane %v696, %v705
        %v707 = vmul.f32 %v687, %v702
        %v708 = vmul.f32 %v687, %v706
        %v709 = vadd.f32 %v680, %v707
        %v710 = vadd.f32 %v681, %v708
        %s711 = scalar_lea.vmem %s1, 72
        %v712 = vld [vmem:[%s711] sm:$0xf]
        %714 = vset.pattern.permute.xlu0 0
        %715 = vperm.xlu0 %714, %v712
        %v716 = vpop.permute.xlu0 %715
        %v718 = vlaneseq
        %v719 = vshrl.u32 %v718, 7
        %v720 = vsub.s32 2, %v719
        %v721 = vrot.slane %v251, %v720
        %v722 = vlaneseq
        %v723 = vshrl.u32 %v722, 7
        %v724 = vsub.s32 6, %v723
        %v725 = vrot.slane %v251, %v724
        %v728 = vlaneseq
        %v729 = vshrl.u32 %v728, 7
        %v730 = vsub.s32 2, %v729
        %v731 = vrot.slane %v721, %v730
        %v732 = vlaneseq
        %v733 = vshrl.u32 %v732, 7
        %v734 = vsub.s32 2, %v733
        %v735 = vrot.slane %v725, %v734
        %v736 = vmul.f32 %v716, %v731
        %v737 = vmul.f32 %v716, %v735
        %v738 = vadd.f32 %v709, %v736
        %v739 = vadd.f32 %v710, %v737
        %s740 = scalar_lea.vmem %s1, 76
        %v741 = vld [vmem:[%s740] sm:$0xf]
        %743 = vset.pattern.permute.xlu0 0
        %744 = vperm.xlu0 %743, %v741
        %v745 = vpop.permute.xlu0 %744
        %v747 = vlaneseq
        %v748 = vshrl.u32 %v747, 7
        %v749 = vsub.s32 3, %v748
        %v750 = vrot.slane %v251, %v749
        %v751 = vlaneseq
        %v752 = vshrl.u32 %v751, 7
        %v753 = vsub.s32 7, %v752
        %v754 = vrot.slane %v251, %v753
        %v757 = vlaneseq
        %v758 = vshrl.u32 %v757, 7
        %v759 = vsub.s32 3, %v758
        %v760 = vrot.slane %v750, %v759
        %v761 = vlaneseq
        %v762 = vshrl.u32 %v761, 7
        %v763 = vsub.s32 3, %v762
        %v764 = vrot.slane %v754, %v763
        %v765 = vmul.f32 %v745, %v760
        %v766 = vmul.f32 %v745, %v764
        %v767 = vadd.f32 %v738, %v765
        %v768 = vadd.f32 %v739, %v766
        %769 = vrot.lane.b32.xlu0 %v251, 127
        %v770 = vpop.permute.xlu0 %769
        %771 = vrot.lane.b32.xlu0 %v259, 127
        %v772 = vpop.permute.xlu0 %771
        %vm773 = vcmp.lt.s32.totalorder %v266, 127
        %v774 = vsel %vm773, %v770, %v772
        %v775 = vsel %vm773, %v772, %v770
        %s776 = scalar_lea.vmem %s5, 5
        %v777 = vld [vmem:[%s776] ss:$8 sm:$0x3]
        %v779 = vlaneseq
        %v780 = vshrl.u32 %v779, 7
        %v781 = vsub.s32 0, %v780
        %v782 = vrot.slane %v777, %v781
        %v783 = vlaneseq
        %v784 = vshrl.u32 %v783, 7
        %v785 = vsub.s32 1, %v784
        %v786 = vrot.slane %v777, %v785
        %v789 = vmul.f32 %v774, %v782
        %v790 = vmul.f32 %v775, %v786
        %s791 = scalar_lea.vmem %s1, 80
        %v792 = vld [vmem:[%s791] sm:$0xf]
        %794 = vset.pattern.permute.xlu0 0
        %795 = vperm.xlu0 %794, %v792
        %v796 = vpop.permute.xlu0 %795
        %v798 = vlaneseq
        %v799 = vshrl.u32 %v798, 7
        %v800 = vsub.s32 0, %v799
        %v801 = vrot.slane %v789, %v800
        %v802 = vlaneseq
        %v803 = vshrl.u32 %v802, 7
        %v804 = vsub.s32 0, %v803
        %v805 = vrot.slane %v790, %v804
        %v806 = vmul.f32 %v796, %v801
        %v807 = vmul.f32 %v796, %v805
        %v808 = vadd.f32 %v767, %v806
        %v809 = vadd.f32 %v768, %v807
        %s810 = scalar_lea.vmem %s1, 84
        %v811 = vld [vmem:[%s810] sm:$0xf]
        %813 = vset.pattern.permute.xlu0 0
        %814 = vperm.xlu0 %813, %v811
        %v815 = vpop.permute.xlu0 %814
        %v817 = vlaneseq
        %v818 = vshrl.u32 %v817, 7
        %v819 = vsub.s32 1, %v818
        %v820 = vrot.slane %v789, %v819
        %v821 = vlaneseq
        %v822 = vshrl.u32 %v821, 7
        %v823 = vsub.s32 1, %v822
        %v824 = vrot.slane %v790, %v823
        %v825 = vmul.f32 %v815, %v820
        %v826 = vmul.f32 %v815, %v824
        %v827 = vadd.f32 %v808, %v825
        %v828 = vadd.f32 %v809, %v826
        %s829 = scalar_lea.vmem %s1, 88
        %v830 = vld [vmem:[%s829] sm:$0xf]
        %832 = vset.pattern.permute.xlu0 0
        %833 = vperm.xlu0 %832, %v830
        %v834 = vpop.permute.xlu0 %833
        %v836 = vlaneseq
        %v837 = vshrl.u32 %v836, 7
        %v838 = vsub.s32 2, %v837
        %v839 = vrot.slane %v789, %v838
        %v840 = vlaneseq
        %v841 = vshrl.u32 %v840, 7
        %v842 = vsub.s32 2, %v841
        %v843 = vrot.slane %v790, %v842
        %v844 = vmul.f32 %v834, %v839
        %v845 = vmul.f32 %v834, %v843
        %v846 = vadd.f32 %v827, %v844
        %v847 = vadd.f32 %v828, %v845
        %s848 = scalar_lea.vmem %s1, 92
        %v849 = vld [vmem:[%s848] sm:$0xf]
        %851 = vset.pattern.permute.xlu0 0
        %852 = vperm.xlu0 %851, %v849
        %v853 = vpop.permute.xlu0 %852
        %v855 = vlaneseq
        %v856 = vshrl.u32 %v855, 7
        %v857 = vsub.s32 3, %v856
        %v858 = vrot.slane %v789, %v857
        %v859 = vlaneseq
        %v860 = vshrl.u32 %v859, 7
        %v861 = vsub.s32 3, %v860
        %v862 = vrot.slane %v790, %v861
        %v863 = vmul.f32 %v853, %v858
        %v864 = vmul.f32 %v853, %v862
        %v865 = vadd.f32 %v846, %v863
        %v866 = vadd.f32 %v847, %v864
        %867 = vrot.lane.b32.xlu0 %v251, 113
        %v868 = vpop.permute.xlu0 %867
        %869 = vrot.lane.b32.xlu0 %v259, 113
        %v870 = vpop.permute.xlu0 %869
        %vm871 = vcmp.lt.s32.totalorder %v266, 113
        %v872 = vsel %vm871, %v868, %v870
        %v873 = vsel %vm871, %v870, %v868
        %s874 = scalar_lea.vmem %s5, 6
        %v875 = vld [vmem:[%s874] ss:$8 sm:$0x3]
        %v877 = vlaneseq
        %v878 = vshrl.u32 %v877, 7
        %v879 = vsub.s32 0, %v878
        %v880 = vrot.slane %v875, %v879
        %v881 = vlaneseq
        %v882 = vshrl.u32 %v881, 7
        %v883 = vsub.s32 1, %v882
        %v884 = vrot.slane %v875, %v883
        %v887 = vmul.f32 %v872, %v880
        %v888 = vmul.f32 %v873, %v884
        %s889 = scalar_lea.vmem %s1, 96
        %v890 = vld [vmem:[%s889] sm:$0xf]
        %892 = vset.pattern.permute.xlu0 0
        %893 = vperm.xlu0 %892, %v890
        %v894 = vpop.permute.xlu0 %893
        %v896 = vlaneseq
        %v897 = vshrl.u32 %v896, 7
        %v898 = vsub.s32 0, %v897
        %v899 = vrot.slane %v887, %v898
        %v900 = vlaneseq
        %v901 = vshrl.u32 %v900, 7
        %v902 = vsub.s32 0, %v901
        %v903 = vrot.slane %v888, %v902
        %v904 = vmul.f32 %v894, %v899
        %v905 = vmul.f32 %v894, %v903
        %v906 = vadd.f32 %v865, %v904
        %v907 = vadd.f32 %v866, %v905
        %s908 = scalar_lea.vmem %s1, 100
        %v909 = vld [vmem:[%s908] sm:$0xf]
        %911 = vset.pattern.permute.xlu0 0
        %912 = vperm.xlu0 %911, %v909
        %v913 = vpop.permute.xlu0 %912
        %v915 = vlaneseq
        %v916 = vshrl.u32 %v915, 7
        %v917 = vsub.s32 1, %v916
        %v918 = vrot.slane %v887, %v917
        %v919 = vlaneseq
        %v920 = vshrl.u32 %v919, 7
        %v921 = vsub.s32 1, %v920
        %v922 = vrot.slane %v888, %v921
        %v923 = vmul.f32 %v913, %v918
        %v924 = vmul.f32 %v913, %v922
        %v925 = vadd.f32 %v906, %v923
        %v926 = vadd.f32 %v907, %v924
        %s927 = scalar_lea.vmem %s1, 104
        %v928 = vld [vmem:[%s927] sm:$0xf]
        %930 = vset.pattern.permute.xlu0 0
        %931 = vperm.xlu0 %930, %v928
        %v932 = vpop.permute.xlu0 %931
        %v934 = vlaneseq
        %v935 = vshrl.u32 %v934, 7
        %v936 = vsub.s32 2, %v935
        %v937 = vrot.slane %v887, %v936
        %v938 = vlaneseq
        %v939 = vshrl.u32 %v938, 7
        %v940 = vsub.s32 2, %v939
        %v941 = vrot.slane %v888, %v940
        %v942 = vmul.f32 %v932, %v937
        %v943 = vmul.f32 %v932, %v941
        %v944 = vadd.f32 %v925, %v942
        %v945 = vadd.f32 %v926, %v943
        %s946 = scalar_lea.vmem %s1, 108
        %v947 = vld [vmem:[%s946] sm:$0xf]
        %949 = vset.pattern.permute.xlu0 0
        %950 = vperm.xlu0 %949, %v947
        %v951 = vpop.permute.xlu0 %950
        %v953 = vlaneseq
        %v954 = vshrl.u32 %v953, 7
        %v955 = vsub.s32 3, %v954
        %v956 = vrot.slane %v887, %v955
        %v957 = vlaneseq
        %v958 = vshrl.u32 %v957, 7
        %v959 = vsub.s32 3, %v958
        %v960 = vrot.slane %v888, %v959
        %v961 = vmul.f32 %v951, %v956
        %v962 = vmul.f32 %v951, %v960
        %v963 = vadd.f32 %v944, %v961
        %v964 = vadd.f32 %v945, %v962
        %965 = vrot.lane.b32.xlu0 %v251, 112
        %v966 = vpop.permute.xlu0 %965
        %967 = vrot.lane.b32.xlu0 %v259, 112
        %v968 = vpop.permute.xlu0 %967
        %vm969 = vcmp.lt.s32.totalorder %v266, 112
        %v970 = vsel %vm969, %v966, %v968
        %v971 = vsel %vm969, %v968, %v966
        %s972 = scalar_lea.vmem %s5, 7
        %v973 = vld [vmem:[%s972] ss:$8 sm:$0x3]
        %v975 = vlaneseq
        %v976 = vshrl.u32 %v975, 7
        %v977 = vsub.s32 0, %v976
        %v978 = vrot.slane %v973, %v977
        %v979 = vlaneseq
        %v980 = vshrl.u32 %v979, 7
        %v981 = vsub.s32 1, %v980
        %v982 = vrot.slane %v973, %v981
        %v985 = vmul.f32 %v970, %v978
        %v986 = vmul.f32 %v971, %v982
        %s987 = scalar_lea.vmem %s1, 112
        %v988 = vld [vmem:[%s987] sm:$0xf]
        %990 = vset.pattern.permute.xlu0 0
        %991 = vperm.xlu0 %990, %v988
        %v992 = vpop.permute.xlu0 %991
        %v994 = vlaneseq
        %v995 = vshrl.u32 %v994, 7
        %v996 = vsub.s32 0, %v995
        %v997 = vrot.slane %v985, %v996
        %v998 = vlaneseq
        %v999 = vshrl.u32 %v998, 7
        %v1000 = vsub.s32 0, %v999
        %v1001 = vrot.slane %v986, %v1000
        %v1002 = vmul.f32 %v992, %v997
        %v1003 = vmul.f32 %v992, %v1001
        %v1004 = vadd.f32 %v963, %v1002
        %v1005 = vadd.f32 %v964, %v1003
        %s1006 = scalar_lea.vmem %s1, 116
        %v1007 = vld [vmem:[%s1006] sm:$0xf]
        %1009 = vset.pattern.permute.xlu0 0
        %1010 = vperm.xlu0 %1009, %v1007
        %v1011 = vpop.permute.xlu0 %1010
        %v1013 = vlaneseq
        %v1014 = vshrl.u32 %v1013, 7
        %v1015 = vsub.s32 1, %v1014
        %v1016 = vrot.slane %v985, %v1015
        %v1017 = vlaneseq
        %v1018 = vshrl.u32 %v1017, 7
        %v1019 = vsub.s32 1, %v1018
        %v1020 = vrot.slane %v986, %v1019
        %v1021 = vmul.f32 %v1011, %v1016
        %v1022 = vmul.f32 %v1011, %v1020
        %v1023 = vadd.f32 %v1004, %v1021
        %v1024 = vadd.f32 %v1005, %v1022
        %s1025 = scalar_lea.vmem %s1, 120
        %v1026 = vld [vmem:[%s1025] sm:$0xf]
        %1028 = vset.pattern.permute.xlu0 0
        %1029 = vperm.xlu0 %1028, %v1026
        %v1030 = vpop.permute.xlu0 %1029
        %v1032 = vlaneseq
        %v1033 = vshrl.u32 %v1032, 7
        %v1034 = vsub.s32 2, %v1033
        %v1035 = vrot.slane %v985, %v1034
        %v1036 = vlaneseq
        %v1037 = vshrl.u32 %v1036, 7
        %v1038 = vsub.s32 2, %v1037
        %v1039 = vrot.slane %v986, %v1038
        %v1040 = vmul.f32 %v1030, %v1035
        %v1041 = vmul.f32 %v1030, %v1039
        %v1042 = vadd.f32 %v1023, %v1040
        %v1043 = vadd.f32 %v1024, %v1041
        %s1044 = scalar_lea.vmem %s1, 124
        %v1045 = vld [vmem:[%s1044] sm:$0xf]
        %1047 = vset.pattern.permute.xlu0 0
        %1048 = vperm.xlu0 %1047, %v1045
        %v1049 = vpop.permute.xlu0 %1048
        %v1051 = vlaneseq
        %v1052 = vshrl.u32 %v1051, 7
        %v1053 = vsub.s32 3, %v1052
        %v1054 = vrot.slane %v985, %v1053
        %v1055 = vlaneseq
        %v1056 = vshrl.u32 %v1055, 7
        %v1057 = vsub.s32 3, %v1056
        %v1058 = vrot.slane %v986, %v1057
        %v1059 = vmul.f32 %v1049, %v1054
        %v1060 = vmul.f32 %v1049, %v1058
        %v1061 = vadd.f32 %v1042, %v1059
        %v1062 = vadd.f32 %v1043, %v1060
        %1063 = vrot.lane.b32.xlu0 %v251, 111
        %v1064 = vpop.permute.xlu0 %1063
        %1065 = vrot.lane.b32.xlu0 %v259, 111
        %v1066 = vpop.permute.xlu0 %1065
        %vm1067 = vcmp.lt.s32.totalorder %v266, 111
        %v1068 = vsel %vm1067, %v1064, %v1066
        %v1069 = vsel %vm1067, %v1066, %v1064
        %s1070 = scalar_lea.vmem %s5, 16
        %v1071 = vld [vmem:[%s1070] ss:$8 sm:$0x3]
        %v1073 = vlaneseq
        %v1074 = vshrl.u32 %v1073, 7
        %v1075 = vsub.s32 0, %v1074
        %v1076 = vrot.slane %v1071, %v1075
        %v1077 = vlaneseq
        %v1078 = vshrl.u32 %v1077, 7
        %v1079 = vsub.s32 1, %v1078
        %v1080 = vrot.slane %v1071, %v1079
        %v1083 = vmul.f32 %v1068, %v1076
        %v1084 = vmul.f32 %v1069, %v1080
        %s1085 = scalar_lea.vmem %s1, 128
        %v1086 = vld [vmem:[%s1085] sm:$0xf]
        %1088 = vset.pattern.permute.xlu0 0
        %1089 = vperm.xlu0 %1088, %v1086
        %v1090 = vpop.permute.xlu0 %1089
        %v1092 = vlaneseq
        %v1093 = vshrl.u32 %v1092, 7
        %v1094 = vsub.s32 0, %v1093
        %v1095 = vrot.slane %v1083, %v1094
        %v1096 = vlaneseq
        %v1097 = vshrl.u32 %v1096, 7
        %v1098 = vsub.s32 0, %v1097
        %v1099 = vrot.slane %v1084, %v1098
        %v1100 = vmul.f32 %v1090, %v1095
        %v1101 = vmul.f32 %v1090, %v1099
        %v1102 = vadd.f32 %v1061, %v1100
        %v1103 = vadd.f32 %v1062, %v1101
        %s1104 = scalar_lea.vmem %s1, 132
        %v1105 = vld [vmem:[%s1104] sm:$0xf]
        %1107 = vset.pattern.permute.xlu0 0
        %1108 = vperm.xlu0 %1107, %v1105
        %v1109 = vpop.permute.xlu0 %1108
        %v1111 = vlaneseq
        %v1112 = vshrl.u32 %v1111, 7
        %v1113 = vsub.s32 1, %v1112
        %v1114 = vrot.slane %v1083, %v1113
        %v1115 = vlaneseq
        %v1116 = vshrl.u32 %v1115, 7
        %v1117 = vsub.s32 1, %v1116
        %v1118 = vrot.slane %v1084, %v1117
        %v1119 = vmul.f32 %v1109, %v1114
        %v1120 = vmul.f32 %v1109, %v1118
        %v1121 = vadd.f32 %v1102, %v1119
        %v1122 = vadd.f32 %v1103, %v1120
        %s1123 = scalar_lea.vmem %s1, 136
        %v1124 = vld [vmem:[%s1123] sm:$0xf]
        %1126 = vset.pattern.permute.xlu0 0
        %1127 = vperm.xlu0 %1126, %v1124
        %v1128 = vpop.permute.xlu0 %1127
        %v1130 = vlaneseq
        %v1131 = vshrl.u32 %v1130, 7
        %v1132 = vsub.s32 2, %v1131
        %v1133 = vrot.slane %v1083, %v1132
        %v1134 = vlaneseq
        %v1135 = vshrl.u32 %v1134, 7
        %v1136 = vsub.s32 2, %v1135
        %v1137 = vrot.slane %v1084, %v1136
        %v1138 = vmul.f32 %v1128, %v1133
        %v1139 = vmul.f32 %v1128, %v1137
        %v1140 = vadd.f32 %v1121, %v1138
        %v1141 = vadd.f32 %v1122, %v1139
        %s1142 = scalar_lea.vmem %s1, 140
        %v1143 = vld [vmem:[%s1142] sm:$0xf]
        %1145 = vset.pattern.permute.xlu0 0
        %1146 = vperm.xlu0 %1145, %v1143
        %v1147 = vpop.permute.xlu0 %1146
        %v1149 = vlaneseq
        %v1150 = vshrl.u32 %v1149, 7
        %v1151 = vsub.s32 3, %v1150
        %v1152 = vrot.slane %v1083, %v1151
        %v1153 = vlaneseq
        %v1154 = vshrl.u32 %v1153, 7
        %v1155 = vsub.s32 3, %v1154
        %v1156 = vrot.slane %v1084, %v1155
        %v1157 = vmul.f32 %v1147, %v1152
        %v1158 = vmul.f32 %v1147, %v1156
        %v1159 = vadd.f32 %v1140, %v1157
        %v1160 = vadd.f32 %v1141, %v1158
        %v1161 = vmax.f32 %v1159, 0.0
        %v1162 = vmax.f32 %v1160, 0.0
        %v1163 = vld [vmem:[%s4] sm:$0xf]
        %1165 = vset.pattern.permute.xlu0 0
        %1166 = vperm.xlu0 %1165, %v1163
        %v1167 = vpop.permute.xlu0 %1166
        %1169 = vrot.lane.b32.xlu0 %v1161, 17
        %v1170 = vpop.permute.xlu0 %1169
        %1171 = vrot.lane.b32.xlu0 %v1162, 17
        %v1172 = vpop.permute.xlu0 %1171
        %v1173 = vsel %vm267, %v1170, %v1172
        %v1174 = vsel %vm267, %v1172, %v1170
        %v1175 = vmul.f32 %v1174, %v275
        %v1176 = vmul.f32 %v1173, %v279
        %v1177 = vld [vmem:[%s3] sm:$0xf]
        %1179 = vset.pattern.permute.xlu0 0
        %1180 = vperm.xlu0 %1179, %v1177
        %v1181 = vpop.permute.xlu0 %1180
        %v1183 = vlaneseq
        %v1184 = vshrl.u32 %v1183, 7
        %v1185 = vsub.s32 0, %v1184
        %v1186 = vrot.slane %v1175, %v1185
        %v1187 = vlaneseq
        %v1188 = vshrl.u32 %v1187, 7
        %v1189 = vsub.s32 0, %v1188
        %v1190 = vrot.slane %v1176, %v1189
        %v1191 = vmul.f32 %v1181, %v1186
        %v1192 = vmul.f32 %v1181, %v1190
        %v1193 = vadd.f32 %v1167, %v1191
        %v1194 = vadd.f32 %v1167, %v1192
        %s1195 = scalar_lea.vmem %s3, 4
        %v1196 = vld [vmem:[%s1195] sm:$0xf]
        %1198 = vset.pattern.permute.xlu0 0
        %1199 = vperm.xlu0 %1198, %v1196
        %v1200 = vpop.permute.xlu0 %1199
        %v1202 = vlaneseq
        %v1203 = vshrl.u32 %v1202, 7
        %v1204 = vsub.s32 1, %v1203
        %v1205 = vrot.slane %v1175, %v1204
        %v1206 = vlaneseq
        %v1207 = vshrl.u32 %v1206, 7
        %v1208 = vsub.s32 1, %v1207
        %v1209 = vrot.slane %v1176, %v1208
        %v1210 = vmul.f32 %v1200, %v1205
        %v1211 = vmul.f32 %v1200, %v1209
        %v1212 = vadd.f32 %v1193, %v1210
        %v1213 = vadd.f32 %v1194, %v1211
        %s1214 = scalar_lea.vmem %s3, 8
        %v1215 = vld [vmem:[%s1214] sm:$0xf]
        %1217 = vset.pattern.permute.xlu0 0
        %1218 = vperm.xlu0 %1217, %v1215
        %v1219 = vpop.permute.xlu0 %1218
        %v1221 = vlaneseq
        %v1222 = vshrl.u32 %v1221, 7
        %v1223 = vsub.s32 2, %v1222
        %v1224 = vrot.slane %v1175, %v1223
        %v1225 = vlaneseq
        %v1226 = vshrl.u32 %v1225, 7
        %v1227 = vsub.s32 2, %v1226
        %v1228 = vrot.slane %v1176, %v1227
        %v1229 = vmul.f32 %v1219, %v1224
        %v1230 = vmul.f32 %v1219, %v1228
        %v1231 = vadd.f32 %v1212, %v1229
        %v1232 = vadd.f32 %v1213, %v1230
        %s1233 = scalar_lea.vmem %s3, 12
        %v1234 = vld [vmem:[%s1233] sm:$0xf]
        %1236 = vset.pattern.permute.xlu0 0
        %1237 = vperm.xlu0 %1236, %v1234
        %v1238 = vpop.permute.xlu0 %1237
        %v1240 = vlaneseq
        %v1241 = vshrl.u32 %v1240, 7
        %v1242 = vsub.s32 3, %v1241
        %v1243 = vrot.slane %v1175, %v1242
        %v1244 = vlaneseq
        %v1245 = vshrl.u32 %v1244, 7
        %v1246 = vsub.s32 3, %v1245
        %v1247 = vrot.slane %v1176, %v1246
        %v1248 = vmul.f32 %v1238, %v1243
        %v1249 = vmul.f32 %v1238, %v1247
        %v1250 = vadd.f32 %v1231, %v1248
        %v1251 = vadd.f32 %v1232, %v1249
        %1252 = vrot.lane.b32.xlu0 %v1161, 16
        %v1253 = vpop.permute.xlu0 %1252
        %1254 = vrot.lane.b32.xlu0 %v1162, 16
        %v1255 = vpop.permute.xlu0 %1254
        %v1256 = vsel %vm363, %v1253, %v1255
        %v1257 = vsel %vm363, %v1255, %v1253
        %v1258 = vmul.f32 %v1257, %v372
        %v1259 = vmul.f32 %v1256, %v376
        %s1260 = scalar_lea.vmem %s3, 16
        %v1261 = vld [vmem:[%s1260] sm:$0xf]
        %1263 = vset.pattern.permute.xlu0 0
        %1264 = vperm.xlu0 %1263, %v1261
        %v1265 = vpop.permute.xlu0 %1264
        %v1267 = vlaneseq
        %v1268 = vshrl.u32 %v1267, 7
        %v1269 = vsub.s32 0, %v1268
        %v1270 = vrot.slane %v1258, %v1269
        %v1271 = vlaneseq
        %v1272 = vshrl.u32 %v1271, 7
        %v1273 = vsub.s32 0, %v1272
        %v1274 = vrot.slane %v1259, %v1273
        %v1275 = vmul.f32 %v1265, %v1270
        %v1276 = vmul.f32 %v1265, %v1274
        %v1277 = vadd.f32 %v1250, %v1275
        %v1278 = vadd.f32 %v1251, %v1276
        %s1279 = scalar_lea.vmem %s3, 20
        %v1280 = vld [vmem:[%s1279] sm:$0xf]
        %1282 = vset.pattern.permute.xlu0 0
        %1283 = vperm.xlu0 %1282, %v1280
        %v1284 = vpop.permute.xlu0 %1283
        %v1286 = vlaneseq
        %v1287 = vshrl.u32 %v1286, 7
        %v1288 = vsub.s32 1, %v1287
        %v1289 = vrot.slane %v1258, %v1288
        %v1290 = vlaneseq
        %v1291 = vshrl.u32 %v1290, 7
        %v1292 = vsub.s32 1, %v1291
        %v1293 = vrot.slane %v1259, %v1292
        %v1294 = vmul.f32 %v1284, %v1289
        %v1295 = vmul.f32 %v1284, %v1293
        %v1296 = vadd.f32 %v1277, %v1294
        %v1297 = vadd.f32 %v1278, %v1295
        %s1298 = scalar_lea.vmem %s3, 24
        %v1299 = vld [vmem:[%s1298] sm:$0xf]
        %1301 = vset.pattern.permute.xlu0 0
        %1302 = vperm.xlu0 %1301, %v1299
        %v1303 = vpop.permute.xlu0 %1302
        %v1305 = vlaneseq
        %v1306 = vshrl.u32 %v1305, 7
        %v1307 = vsub.s32 2, %v1306
        %v1308 = vrot.slane %v1258, %v1307
        %v1309 = vlaneseq
        %v1310 = vshrl.u32 %v1309, 7
        %v1311 = vsub.s32 2, %v1310
        %v1312 = vrot.slane %v1259, %v1311
        %v1313 = vmul.f32 %v1303, %v1308
        %v1314 = vmul.f32 %v1303, %v1312
        %v1315 = vadd.f32 %v1296, %v1313
        %v1316 = vadd.f32 %v1297, %v1314
        %s1317 = scalar_lea.vmem %s3, 28
        %v1318 = vld [vmem:[%s1317] sm:$0xf]
        %1320 = vset.pattern.permute.xlu0 0
        %1321 = vperm.xlu0 %1320, %v1318
        %v1322 = vpop.permute.xlu0 %1321
        %v1324 = vlaneseq
        %v1325 = vshrl.u32 %v1324, 7
        %v1326 = vsub.s32 3, %v1325
        %v1327 = vrot.slane %v1258, %v1326
        %v1328 = vlaneseq
        %v1329 = vshrl.u32 %v1328, 7
        %v1330 = vsub.s32 3, %v1329
        %v1331 = vrot.slane %v1259, %v1330
        %v1332 = vmul.f32 %v1322, %v1327
        %v1333 = vmul.f32 %v1322, %v1331
        %v1334 = vadd.f32 %v1315, %v1332
        %v1335 = vadd.f32 %v1316, %v1333
        %1336 = vrot.lane.b32.xlu0 %v1161, 15
        %v1337 = vpop.permute.xlu0 %1336
        %1338 = vrot.lane.b32.xlu0 %v1162, 15
        %v1339 = vpop.permute.xlu0 %1338
        %v1340 = vsel %vm461, %v1337, %v1339
        %v1341 = vsel %vm461, %v1339, %v1337
        %v1342 = vmul.f32 %v1341, %v470
        %v1343 = vmul.f32 %v1340, %v474
        %s1344 = scalar_lea.vmem %s3, 32
        %v1345 = vld [vmem:[%s1344] sm:$0xf]
        %1347 = vset.pattern.permute.xlu0 0
        %1348 = vperm.xlu0 %1347, %v1345
        %v1349 = vpop.permute.xlu0 %1348
        %v1351 = vlaneseq
        %v1352 = vshrl.u32 %v1351, 7
        %v1353 = vsub.s32 0, %v1352
        %v1354 = vrot.slane %v1342, %v1353
        %v1355 = vlaneseq
        %v1356 = vshrl.u32 %v1355, 7
        %v1357 = vsub.s32 0, %v1356
        %v1358 = vrot.slane %v1343, %v1357
        %v1359 = vmul.f32 %v1349, %v1354
        %v1360 = vmul.f32 %v1349, %v1358
        %v1361 = vadd.f32 %v1334, %v1359
        %v1362 = vadd.f32 %v1335, %v1360
        %s1363 = scalar_lea.vmem %s3, 36
        %v1364 = vld [vmem:[%s1363] sm:$0xf]
        %1366 = vset.pattern.permute.xlu0 0
        %1367 = vperm.xlu0 %1366, %v1364
        %v1368 = vpop.permute.xlu0 %1367
        %v1370 = vlaneseq
        %v1371 = vshrl.u32 %v1370, 7
        %v1372 = vsub.s32 1, %v1371
        %v1373 = vrot.slane %v1342, %v1372
        %v1374 = vlaneseq
        %v1375 = vshrl.u32 %v1374, 7
        %v1376 = vsub.s32 1, %v1375
        %v1377 = vrot.slane %v1343, %v1376
        %v1378 = vmul.f32 %v1368, %v1373
        %v1379 = vmul.f32 %v1368, %v1377
        %v1380 = vadd.f32 %v1361, %v1378
        %v1381 = vadd.f32 %v1362, %v1379
        %s1382 = scalar_lea.vmem %s3, 40
        %v1383 = vld [vmem:[%s1382] sm:$0xf]
        %1385 = vset.pattern.permute.xlu0 0
        %1386 = vperm.xlu0 %1385, %v1383
        %v1387 = vpop.permute.xlu0 %1386
        %v1389 = vlaneseq
        %v1390 = vshrl.u32 %v1389, 7
        %v1391 = vsub.s32 2, %v1390
        %v1392 = vrot.slane %v1342, %v1391
        %v1393 = vlaneseq
        %v1394 = vshrl.u32 %v1393, 7
        %v1395 = vsub.s32 2, %v1394
        %v1396 = vrot.slane %v1343, %v1395
        %v1397 = vmul.f32 %v1387, %v1392
        %v1398 = vmul.f32 %v1387, %v1396
        %v1399 = vadd.f32 %v1380, %v1397
        %v1400 = vadd.f32 %v1381, %v1398
        %s1401 = scalar_lea.vmem %s3, 44
        %v1402 = vld [vmem:[%s1401] sm:$0xf]
        %1404 = vset.pattern.permute.xlu0 0
        %1405 = vperm.xlu0 %1404, %v1402
        %v1406 = vpop.permute.xlu0 %1405
        %v1408 = vlaneseq
        %v1409 = vshrl.u32 %v1408, 7
        %v1410 = vsub.s32 3, %v1409
        %v1411 = vrot.slane %v1342, %v1410
        %v1412 = vlaneseq
        %v1413 = vshrl.u32 %v1412, 7
        %v1414 = vsub.s32 3, %v1413
        %v1415 = vrot.slane %v1343, %v1414
        %v1416 = vmul.f32 %v1406, %v1411
        %v1417 = vmul.f32 %v1406, %v1415
        %v1418 = vadd.f32 %v1399, %v1416
        %v1419 = vadd.f32 %v1400, %v1417
        %1420 = vrot.lane.b32.xlu0 %v1161, 1
        %v1421 = vpop.permute.xlu0 %1420
        %1422 = vrot.lane.b32.xlu0 %v1162, 1
        %v1423 = vpop.permute.xlu0 %1422
        %v1424 = vsel %vm559, %v1421, %v1423
        %v1425 = vsel %vm559, %v1423, %v1421
        %v1426 = vmul.f32 %v1425, %v568
        %v1427 = vmul.f32 %v1424, %v572
        %s1428 = scalar_lea.vmem %s3, 48
        %v1429 = vld [vmem:[%s1428] sm:$0xf]
        %1431 = vset.pattern.permute.xlu0 0
        %1432 = vperm.xlu0 %1431, %v1429
        %v1433 = vpop.permute.xlu0 %1432
        %v1435 = vlaneseq
        %v1436 = vshrl.u32 %v1435, 7
        %v1437 = vsub.s32 0, %v1436
        %v1438 = vrot.slane %v1426, %v1437
        %v1439 = vlaneseq
        %v1440 = vshrl.u32 %v1439, 7
        %v1441 = vsub.s32 0, %v1440
        %v1442 = vrot.slane %v1427, %v1441
        %v1443 = vmul.f32 %v1433, %v1438
        %v1444 = vmul.f32 %v1433, %v1442
        %v1445 = vadd.f32 %v1418, %v1443
        %v1446 = vadd.f32 %v1419, %v1444
        %s1447 = scalar_lea.vmem %s3, 52
        %v1448 = vld [vmem:[%s1447] sm:$0xf]
        %1450 = vset.pattern.permute.xlu0 0
        %1451 = vperm.xlu0 %1450, %v1448
        %v1452 = vpop.permute.xlu0 %1451
        %v1454 = vlaneseq
        %v1455 = vshrl.u32 %v1454, 7
        %v1456 = vsub.s32 1, %v1455
        %v1457 = vrot.slane %v1426, %v1456
        %v1458 = vlaneseq
        %v1459 = vshrl.u32 %v1458, 7
        %v1460 = vsub.s32 1, %v1459
        %v1461 = vrot.slane %v1427, %v1460
        %v1462 = vmul.f32 %v1452, %v1457
        %v1463 = vmul.f32 %v1452, %v1461
        %v1464 = vadd.f32 %v1445, %v1462
        %v1465 = vadd.f32 %v1446, %v1463
        %s1466 = scalar_lea.vmem %s3, 56
        %v1467 = vld [vmem:[%s1466] sm:$0xf]
        %1469 = vset.pattern.permute.xlu0 0
        %1470 = vperm.xlu0 %1469, %v1467
        %v1471 = vpop.permute.xlu0 %1470
        %v1473 = vlaneseq
        %v1474 = vshrl.u32 %v1473, 7
        %v1475 = vsub.s32 2, %v1474
        %v1476 = vrot.slane %v1426, %v1475
        %v1477 = vlaneseq
        %v1478 = vshrl.u32 %v1477, 7
        %v1479 = vsub.s32 2, %v1478
        %v1480 = vrot.slane %v1427, %v1479
        %v1481 = vmul.f32 %v1471, %v1476
        %v1482 = vmul.f32 %v1471, %v1480
        %v1483 = vadd.f32 %v1464, %v1481
        %v1484 = vadd.f32 %v1465, %v1482
        %s1485 = scalar_lea.vmem %s3, 60
        %v1486 = vld [vmem:[%s1485] sm:$0xf]
        %1488 = vset.pattern.permute.xlu0 0
        %1489 = vperm.xlu0 %1488, %v1486
        %v1490 = vpop.permute.xlu0 %1489
        %v1492 = vlaneseq
        %v1493 = vshrl.u32 %v1492, 7
        %v1494 = vsub.s32 3, %v1493
        %v1495 = vrot.slane %v1426, %v1494
        %v1496 = vlaneseq
        %v1497 = vshrl.u32 %v1496, 7
        %v1498 = vsub.s32 3, %v1497
        %v1499 = vrot.slane %v1427, %v1498
        %v1500 = vmul.f32 %v1490, %v1495
        %v1501 = vmul.f32 %v1490, %v1499
        %v1502 = vadd.f32 %v1483, %v1500
        %v1503 = vadd.f32 %v1484, %v1501
        %s1504 = scalar_lea.vmem %s3, 64
        %v1505 = vld [vmem:[%s1504] sm:$0xf]
        %1507 = vset.pattern.permute.xlu0 0
        %1508 = vperm.xlu0 %1507, %v1505
        %v1509 = vpop.permute.xlu0 %1508
        %v1511 = vlaneseq
        %v1512 = vshrl.u32 %v1511, 7
        %v1513 = vsub.s32 0, %v1512
        %v1514 = vrot.slane %v1161, %v1513
        %v1515 = vlaneseq
        %v1516 = vshrl.u32 %v1515, 7
        %v1517 = vsub.s32 0, %v1516
        %v1518 = vrot.slane %v1162, %v1517
        %v1519 = vmul.f32 %v1509, %v1514
        %v1520 = vmul.f32 %v1509, %v1518
        %v1521 = vadd.f32 %v1502, %v1519
        %v1522 = vadd.f32 %v1503, %v1520
        %s1523 = scalar_lea.vmem %s3, 68
        %v1524 = vld [vmem:[%s1523] sm:$0xf]
        %1526 = vset.pattern.permute.xlu0 0
        %1527 = vperm.xlu0 %1526, %v1524
        %v1528 = vpop.permute.xlu0 %1527
        %v1530 = vlaneseq
        %v1531 = vshrl.u32 %v1530, 7
        %v1532 = vsub.s32 1, %v1531
        %v1533 = vrot.slane %v1161, %v1532
        %v1534 = vlaneseq
        %v1535 = vshrl.u32 %v1534, 7
        %v1536 = vsub.s32 1, %v1535
        %v1537 = vrot.slane %v1162, %v1536
        %v1538 = vmul.f32 %v1528, %v1533
        %v1539 = vmul.f32 %v1528, %v1537
        %v1540 = vadd.f32 %v1521, %v1538
        %v1541 = vadd.f32 %v1522, %v1539
        %s1542 = scalar_lea.vmem %s3, 72
        %v1543 = vld [vmem:[%s1542] sm:$0xf]
        %1545 = vset.pattern.permute.xlu0 0
        %1546 = vperm.xlu0 %1545, %v1543
        %v1547 = vpop.permute.xlu0 %1546
        %v1549 = vlaneseq
        %v1550 = vshrl.u32 %v1549, 7
        %v1551 = vsub.s32 2, %v1550
        %v1552 = vrot.slane %v1161, %v1551
        %v1553 = vlaneseq
        %v1554 = vshrl.u32 %v1553, 7
        %v1555 = vsub.s32 2, %v1554
        %v1556 = vrot.slane %v1162, %v1555
        %v1557 = vmul.f32 %v1547, %v1552
        %v1558 = vmul.f32 %v1547, %v1556
        %v1559 = vadd.f32 %v1540, %v1557
        %v1560 = vadd.f32 %v1541, %v1558
        %s1561 = scalar_lea.vmem %s3, 76
        %v1562 = vld [vmem:[%s1561] sm:$0xf]
        %1564 = vset.pattern.permute.xlu0 0
        %1565 = vperm.xlu0 %1564, %v1562
        %v1566 = vpop.permute.xlu0 %1565
        %v1568 = vlaneseq
        %v1569 = vshrl.u32 %v1568, 7
        %v1570 = vsub.s32 3, %v1569
        %v1571 = vrot.slane %v1161, %v1570
        %v1572 = vlaneseq
        %v1573 = vshrl.u32 %v1572, 7
        %v1574 = vsub.s32 3, %v1573
        %v1575 = vrot.slane %v1162, %v1574
        %v1576 = vmul.f32 %v1566, %v1571
        %v1577 = vmul.f32 %v1566, %v1575
        %v1578 = vadd.f32 %v1559, %v1576
        %v1579 = vadd.f32 %v1560, %v1577
        %1580 = vrot.lane.b32.xlu0 %v1161, 127
        %v1581 = vpop.permute.xlu0 %1580
        %1582 = vrot.lane.b32.xlu0 %v1162, 127
        %v1583 = vpop.permute.xlu0 %1582
        %v1584 = vsel %vm773, %v1581, %v1583
        %v1585 = vsel %vm773, %v1583, %v1581
        %v1586 = vmul.f32 %v1584, %v782
        %v1587 = vmul.f32 %v1585, %v786
        %s1588 = scalar_lea.vmem %s3, 80
        %v1589 = vld [vmem:[%s1588] sm:$0xf]
        %1591 = vset.pattern.permute.xlu0 0
        %1592 = vperm.xlu0 %1591, %v1589
        %v1593 = vpop.permute.xlu0 %1592
        %v1595 = vlaneseq
        %v1596 = vshrl.u32 %v1595, 7
        %v1597 = vsub.s32 0, %v1596
        %v1598 = vrot.slane %v1586, %v1597
        %v1599 = vlaneseq
        %v1600 = vshrl.u32 %v1599, 7
        %v1601 = vsub.s32 0, %v1600
        %v1602 = vrot.slane %v1587, %v1601
        %v1603 = vmul.f32 %v1593, %v1598
        %v1604 = vmul.f32 %v1593, %v1602
        %v1605 = vadd.f32 %v1578, %v1603
        %v1606 = vadd.f32 %v1579, %v1604
        %s1607 = scalar_lea.vmem %s3, 84
        %v1608 = vld [vmem:[%s1607] sm:$0xf]
        %1610 = vset.pattern.permute.xlu0 0
        %1611 = vperm.xlu0 %1610, %v1608
        %v1612 = vpop.permute.xlu0 %1611
        %v1614 = vlaneseq
        %v1615 = vshrl.u32 %v1614, 7
        %v1616 = vsub.s32 1, %v1615
        %v1617 = vrot.slane %v1586, %v1616
        %v1618 = vlaneseq
        %v1619 = vshrl.u32 %v1618, 7
        %v1620 = vsub.s32 1, %v1619
        %v1621 = vrot.slane %v1587, %v1620
        %v1622 = vmul.f32 %v1612, %v1617
        %v1623 = vmul.f32 %v1612, %v1621
        %v1624 = vadd.f32 %v1605, %v1622
        %v1625 = vadd.f32 %v1606, %v1623
        %s1626 = scalar_lea.vmem %s3, 88
        %v1627 = vld [vmem:[%s1626] sm:$0xf]
        %1629 = vset.pattern.permute.xlu0 0
        %1630 = vperm.xlu0 %1629, %v1627
        %v1631 = vpop.permute.xlu0 %1630
        %v1633 = vlaneseq
        %v1634 = vshrl.u32 %v1633, 7
        %v1635 = vsub.s32 2, %v1634
        %v1636 = vrot.slane %v1586, %v1635
        %v1637 = vlaneseq
        %v1638 = vshrl.u32 %v1637, 7
        %v1639 = vsub.s32 2, %v1638
        %v1640 = vrot.slane %v1587, %v1639
        %v1641 = vmul.f32 %v1631, %v1636
        %v1642 = vmul.f32 %v1631, %v1640
        %v1643 = vadd.f32 %v1624, %v1641
        %v1644 = vadd.f32 %v1625, %v1642
        %s1645 = scalar_lea.vmem %s3, 92
        %v1646 = vld [vmem:[%s1645] sm:$0xf]
        %1648 = vset.pattern.permute.xlu0 0
        %1649 = vperm.xlu0 %1648, %v1646
        %v1650 = vpop.permute.xlu0 %1649
        %v1652 = vlaneseq
        %v1653 = vshrl.u32 %v1652, 7
        %v1654 = vsub.s32 3, %v1653
        %v1655 = vrot.slane %v1586, %v1654
        %v1656 = vlaneseq
        %v1657 = vshrl.u32 %v1656, 7
        %v1658 = vsub.s32 3, %v1657
        %v1659 = vrot.slane %v1587, %v1658
        %v1660 = vmul.f32 %v1650, %v1655
        %v1661 = vmul.f32 %v1650, %v1659
        %v1662 = vadd.f32 %v1643, %v1660
        %v1663 = vadd.f32 %v1644, %v1661
        %1664 = vrot.lane.b32.xlu0 %v1161, 113
        %v1665 = vpop.permute.xlu0 %1664
        %1666 = vrot.lane.b32.xlu0 %v1162, 113
        %v1667 = vpop.permute.xlu0 %1666
        %v1668 = vsel %vm871, %v1665, %v1667
        %v1669 = vsel %vm871, %v1667, %v1665
        %v1670 = vmul.f32 %v1668, %v880
        %v1671 = vmul.f32 %v1669, %v884
        %s1672 = scalar_lea.vmem %s3, 96
        %v1673 = vld [vmem:[%s1672] sm:$0xf]
        %1675 = vset.pattern.permute.xlu0 0
        %1676 = vperm.xlu0 %1675, %v1673
        %v1677 = vpop.permute.xlu0 %1676
        %v1679 = vlaneseq
        %v1680 = vshrl.u32 %v1679, 7
        %v1681 = vsub.s32 0, %v1680
        %v1682 = vrot.slane %v1670, %v1681
        %v1683 = vlaneseq
        %v1684 = vshrl.u32 %v1683, 7
        %v1685 = vsub.s32 0, %v1684
        %v1686 = vrot.slane %v1671, %v1685
        %v1687 = vmul.f32 %v1677, %v1682
        %v1688 = vmul.f32 %v1677, %v1686
        %v1689 = vadd.f32 %v1662, %v1687
        %v1690 = vadd.f32 %v1663, %v1688
        %s1691 = scalar_lea.vmem %s3, 100
        %v1692 = vld [vmem:[%s1691] sm:$0xf]
        %1694 = vset.pattern.permute.xlu0 0
        %1695 = vperm.xlu0 %1694, %v1692
        %v1696 = vpop.permute.xlu0 %1695
        %v1698 = vlaneseq
        %v1699 = vshrl.u32 %v1698, 7
        %v1700 = vsub.s32 1, %v1699
        %v1701 = vrot.slane %v1670, %v1700
        %v1702 = vlaneseq
        %v1703 = vshrl.u32 %v1702, 7
        %v1704 = vsub.s32 1, %v1703
        %v1705 = vrot.slane %v1671, %v1704
        %v1706 = vmul.f32 %v1696, %v1701
        %v1707 = vmul.f32 %v1696, %v1705
        %v1708 = vadd.f32 %v1689, %v1706
        %v1709 = vadd.f32 %v1690, %v1707
        %s1710 = scalar_lea.vmem %s3, 104
        %v1711 = vld [vmem:[%s1710] sm:$0xf]
        %1713 = vset.pattern.permute.xlu0 0
        %1714 = vperm.xlu0 %1713, %v1711
        %v1715 = vpop.permute.xlu0 %1714
        %v1717 = vlaneseq
        %v1718 = vshrl.u32 %v1717, 7
        %v1719 = vsub.s32 2, %v1718
        %v1720 = vrot.slane %v1670, %v1719
        %v1721 = vlaneseq
        %v1722 = vshrl.u32 %v1721, 7
        %v1723 = vsub.s32 2, %v1722
        %v1724 = vrot.slane %v1671, %v1723
        %v1725 = vmul.f32 %v1715, %v1720
        %v1726 = vmul.f32 %v1715, %v1724
        %v1727 = vadd.f32 %v1708, %v1725
        %v1728 = vadd.f32 %v1709, %v1726
        %s1729 = scalar_lea.vmem %s3, 108
        %v1730 = vld [vmem:[%s1729] sm:$0xf]
        %1732 = vset.pattern.permute.xlu0 0
        %1733 = vperm.xlu0 %1732, %v1730
        %v1734 = vpop.permute.xlu0 %1733
        %v1736 = vlaneseq
        %v1737 = vshrl.u32 %v1736, 7
        %v1738 = vsub.s32 3, %v1737
        %v1739 = vrot.slane %v1670, %v1738
        %v1740 = vlaneseq
        %v1741 = vshrl.u32 %v1740, 7
        %v1742 = vsub.s32 3, %v1741
        %v1743 = vrot.slane %v1671, %v1742
        %v1744 = vmul.f32 %v1734, %v1739
        %v1745 = vmul.f32 %v1734, %v1743
        %v1746 = vadd.f32 %v1727, %v1744
        %v1747 = vadd.f32 %v1728, %v1745
        %1748 = vrot.lane.b32.xlu0 %v1161, 112
        %v1749 = vpop.permute.xlu0 %1748
        %1750 = vrot.lane.b32.xlu0 %v1162, 112
        %v1751 = vpop.permute.xlu0 %1750
        %v1752 = vsel %vm969, %v1749, %v1751
        %v1753 = vsel %vm969, %v1751, %v1749
        %v1754 = vmul.f32 %v1752, %v978
        %v1755 = vmul.f32 %v1753, %v982
        %s1756 = scalar_lea.vmem %s3, 112
        %v1757 = vld [vmem:[%s1756] sm:$0xf]
        %1759 = vset.pattern.permute.xlu0 0
        %1760 = vperm.xlu0 %1759, %v1757
        %v1761 = vpop.permute.xlu0 %1760
        %v1763 = vlaneseq
        %v1764 = vshrl.u32 %v1763, 7
        %v1765 = vsub.s32 0, %v1764
        %v1766 = vrot.slane %v1754, %v1765
        %v1767 = vlaneseq
        %v1768 = vshrl.u32 %v1767, 7
        %v1769 = vsub.s32 0, %v1768
        %v1770 = vrot.slane %v1755, %v1769
        %v1771 = vmul.f32 %v1761, %v1766
        %v1772 = vmul.f32 %v1761, %v1770
        %v1773 = vadd.f32 %v1746, %v1771
        %v1774 = vadd.f32 %v1747, %v1772
        %s1775 = scalar_lea.vmem %s3, 116
        %v1776 = vld [vmem:[%s1775] sm:$0xf]
        %1778 = vset.pattern.permute.xlu0 0
        %1779 = vperm.xlu0 %1778, %v1776
        %v1780 = vpop.permute.xlu0 %1779
        %v1782 = vlaneseq
        %v1783 = vshrl.u32 %v1782, 7
        %v1784 = vsub.s32 1, %v1783
        %v1785 = vrot.slane %v1754, %v1784
        %v1786 = vlaneseq
        %v1787 = vshrl.u32 %v1786, 7
        %v1788 = vsub.s32 1, %v1787
        %v1789 = vrot.slane %v1755, %v1788
        %v1790 = vmul.f32 %v1780, %v1785
        %v1791 = vmul.f32 %v1780, %v1789
        %v1792 = vadd.f32 %v1773, %v1790
        %v1793 = vadd.f32 %v1774, %v1791
        %s1794 = scalar_lea.vmem %s3, 120
        %v1795 = vld [vmem:[%s1794] sm:$0xf]
        %1797 = vset.pattern.permute.xlu0 0
        %1798 = vperm.xlu0 %1797, %v1795
        %v1799 = vpop.permute.xlu0 %1798
        %v1801 = vlaneseq
        %v1802 = vshrl.u32 %v1801, 7
        %v1803 = vsub.s32 2, %v1802
        %v1804 = vrot.slane %v1754, %v1803
        %v1805 = vlaneseq
        %v1806 = vshrl.u32 %v1805, 7
        %v1807 = vsub.s32 2, %v1806
        %v1808 = vrot.slane %v1755, %v1807
        %v1809 = vmul.f32 %v1799, %v1804
        %v1810 = vmul.f32 %v1799, %v1808
        %v1811 = vadd.f32 %v1792, %v1809
        %v1812 = vadd.f32 %v1793, %v1810
        %s1813 = scalar_lea.vmem %s3, 124
        %v1814 = vld [vmem:[%s1813] sm:$0xf]
        %1816 = vset.pattern.permute.xlu0 0
        %1817 = vperm.xlu0 %1816, %v1814
        %v1818 = vpop.permute.xlu0 %1817
        %v1820 = vlaneseq
        %v1821 = vshrl.u32 %v1820, 7
        %v1822 = vsub.s32 3, %v1821
        %v1823 = vrot.slane %v1754, %v1822
        %v1824 = vlaneseq
        %v1825 = vshrl.u32 %v1824, 7
        %v1826 = vsub.s32 3, %v1825
        %v1827 = vrot.slane %v1755, %v1826
        %v1828 = vmul.f32 %v1818, %v1823
        %v1829 = vmul.f32 %v1818, %v1827
        %v1830 = vadd.f32 %v1811, %v1828
        %v1831 = vadd.f32 %v1812, %v1829
        %1832 = vrot.lane.b32.xlu0 %v1161, 111
        %v1833 = vpop.permute.xlu0 %1832
        %1834 = vrot.lane.b32.xlu0 %v1162, 111
        %v1835 = vpop.permute.xlu0 %1834
        %v1836 = vsel %vm1067, %v1833, %v1835
        %v1837 = vsel %vm1067, %v1835, %v1833
        %v1838 = vmul.f32 %v1836, %v1076
        %v1839 = vmul.f32 %v1837, %v1080
        %s1840 = scalar_lea.vmem %s3, 128
        %v1841 = vld [vmem:[%s1840] sm:$0xf]
        %1843 = vset.pattern.permute.xlu0 0
        %1844 = vperm.xlu0 %1843, %v1841
        %v1845 = vpop.permute.xlu0 %1844
        %v1847 = vlaneseq
        %v1848 = vshrl.u32 %v1847, 7
        %v1849 = vsub.s32 0, %v1848
        %v1850 = vrot.slane %v1838, %v1849
        %v1851 = vlaneseq
        %v1852 = vshrl.u32 %v1851, 7
        %v1853 = vsub.s32 0, %v1852
        %v1854 = vrot.slane %v1839, %v1853
        %v1855 = vmul.f32 %v1845, %v1850
        %v1856 = vmul.f32 %v1845, %v1854
        %v1857 = vadd.f32 %v1830, %v1855
        %v1858 = vadd.f32 %v1831, %v1856
        %s1859 = scalar_lea.vmem %s3, 132
        %v1860 = vld [vmem:[%s1859] sm:$0xf]
        %1862 = vset.pattern.permute.xlu0 0
        %1863 = vperm.xlu0 %1862, %v1860
        %v1864 = vpop.permute.xlu0 %1863
        %v1866 = vlaneseq
        %v1867 = vshrl.u32 %v1866, 7
        %v1868 = vsub.s32 1, %v1867
        %v1869 = vrot.slane %v1838, %v1868
        %v1870 = vlaneseq
        %v1871 = vshrl.u32 %v1870, 7
        %v1872 = vsub.s32 1, %v1871
        %v1873 = vrot.slane %v1839, %v1872
        %v1874 = vmul.f32 %v1864, %v1869
        %v1875 = vmul.f32 %v1864, %v1873
        %v1876 = vadd.f32 %v1857, %v1874
        %v1877 = vadd.f32 %v1858, %v1875
        %s1878 = scalar_lea.vmem %s3, 136
        %v1879 = vld [vmem:[%s1878] sm:$0xf]
        %1881 = vset.pattern.permute.xlu0 0
        %1882 = vperm.xlu0 %1881, %v1879
        %v1883 = vpop.permute.xlu0 %1882
        %v1885 = vlaneseq
        %v1886 = vshrl.u32 %v1885, 7
        %v1887 = vsub.s32 2, %v1886
        %v1888 = vrot.slane %v1838, %v1887
        %v1889 = vlaneseq
        %v1890 = vshrl.u32 %v1889, 7
        %v1891 = vsub.s32 2, %v1890
        %v1892 = vrot.slane %v1839, %v1891
        %v1893 = vmul.f32 %v1883, %v1888
        %v1894 = vmul.f32 %v1883, %v1892
        %v1895 = vadd.f32 %v1876, %v1893
        %v1896 = vadd.f32 %v1877, %v1894
        %s1897 = scalar_lea.vmem %s3, 140
        %v1898 = vld [vmem:[%s1897] sm:$0xf]
        %1900 = vset.pattern.permute.xlu0 0
        %1901 = vperm.xlu0 %1900, %v1898
        %v1902 = vpop.permute.xlu0 %1901
        %v1904 = vlaneseq
        %v1905 = vshrl.u32 %v1904, 7
        %v1906 = vsub.s32 3, %v1905
        %v1907 = vrot.slane %v1838, %v1906
        %v1908 = vlaneseq
        %v1909 = vshrl.u32 %v1908, 7
        %v1910 = vsub.s32 3, %v1909
        %v1911 = vrot.slane %v1839, %v1910
        %v1912 = vmul.f32 %v1902, %v1907
        %v1913 = vmul.f32 %v1902, %v1911
        %v1914 = vadd.f32 %v1895, %v1912
        %v1915 = vadd.f32 %v1896, %v1913
        %v1917 = vcombine.high %v250, %v250
        %v1919 = vadd.f32 %v1914, %v250
        %v1920 = vadd.f32 %v1915, %v1917
        %v1923 = vcombine.low %v1919, %v1920
        %1925 = vst [vmem:[%s244] sm:$0xff] %v1923
        %s1926 = sand.u32 %s159, 1
        %s1927 = scalar_lea.sflag [#allocation3], %s1926
        %s1928 = sand.u32 %s159, 1
        %s1929 = smul.addr %s1928, 8
        %s1930 = scalar_lea.vmem [#allocation2], %s1929
        // Predicated region
        $region45: #{tpu_custom_call.1} parent=43 // pred_check
          %p1931 = pneg %p169
        $region46: #{tpu_custom_call.1} parent=43 // pred_check_branch
          %1933 = sbr.rel (%p1931) target = $region48
        $region47: #{tpu_custom_call.1} parent=43 // pred_region
          %s1935 = ssub.s32 128, 128
          %1936 = vsyncadd %s1927, %s1935
          %s1937 = smul.addr %s20, 2
          %s1938 = smul.addr %s1937, 64
          %s1939 = scalar_lea.hbm %s6, %s1938
          %s1941 = sshll.u32 %s1930, 4
          %s1942 = int_to_ptr.vmem [resolvable:$true] %s1941
          %1944 = dma.vmem_to_hbm [thread:$0]  %s1942, 128, %s1939, %s1927
        $region48: #{tpu_custom_call.1} parent=43 // pred_fallthru
          _
      $region44: #{tpu_custom_call.1} parent=5 // pred_fallthru
        _
      %p1945 = scmp.le.s32.totalorder 2, %s15
      // Predicated region
      $region49: #{tpu_custom_call.1} parent=5 // pred_check
        %p1946 = pneg %p1945
      $region50: #{tpu_custom_call.1} parent=5 // pred_check_branch
        %1948 = sbr.rel (%p1946) target = $region52
      $region51: #{tpu_custom_call.1} parent=5 // pred_region
        %s1949 = ssub.s32 %s15, 2
        // Predicated region
        $region53: #{tpu_custom_call.1} parent=51 // pred_check
          %p1950 = pneg %p175
        $region54: #{tpu_custom_call.1} parent=51 // pred_check_branch
          %1952 = sbr.rel (%p1950) target = $region56
        $region55: #{tpu_custom_call.1} parent=51 // pred_region
          %s1953 = sand.u32 %s160, 1
          %s1954 = scalar_lea.sflag [#allocation3], %s1953
          %s1955 = sand.u32 %s160, 1
          %s1956 = smul.addr %s1955, 8
          %s1957 = scalar_lea.vmem [#allocation2], %s1956
          %1958 = dma.done %s1954, 128
        $region56: #{tpu_custom_call.1} parent=51 // pred_fallthru
          _
      $region52: #{tpu_custom_call.1} parent=5 // pred_fallthru
        _
    $region6: #{tpu_custom_call.1} parent=1 // loop_footer
      %s19 = sadd.s32 1, %s15
    $region7: #{tpu_custom_call.1} parent=1 // loop_footer_branch
      %14 = sbr.rel target = $region3
    $region8: #{tpu_custom_call.1} parent=1 // loop_exit
      _
    %1959 = vsyncpa [#allocation3], 1
    %s1960 = scalar_lea.sflag [#allocation3], 1
    %1961 = vsyncpa %s1960, 1

</llo_original>
